<compile_context>
chip_gen: v6e
topology: v6e:2x2x1
jax: 0.10.0
libtpu: 0.0.40
codegen_flags: <defaults>
</compile_context>

<pallas_src>
import jax
import jax.numpy as jnp
from jax.experimental import pallas as pl
from jax.experimental.pallas import tpu as pltpu


def _softmax_lastdim(x):
    """Softmax over the last axis with the EUP approximate reciprocal."""
    m = jnp.max(x, axis=-1, keepdims=True)
    e = jnp.exp(x - m)
    s = jnp.sum(e, axis=-1, keepdims=True)
    return e * pl.reciprocal(s, approx=True)


def _value_gen_kernel(valid_ref, dec_ref, enc_t_ref, enc_f_ref, h0_ref,
                      embT_ref, emb_ref, onehot_ref, wih_ref, whh_ref,
                      bih_ref, bhh_ref, wgw_ref, wgh_ref, wgc_ref, bg_ref,
                      out_ref, h_sc):
    """One grid step == one slot j; the decode loop over k runs in-kernel.

    The GRU hidden state carries across slots (the torch module never
    re-initializes `hidden`), so the j grid axis is a true recurrence and the
    hidden state lives in the `h_sc` VMEM scratch between grid steps.  The
    per-step GRU input `w` and hidden `h` are carried through the rolled
    lax.fori_loop as values.
    """
    j = pl.program_id(0)
    B, H = h0_ref.shape
    K = out_ref.shape[2]                       # max_len
    V = embT_ref.shape[1]

    @pl.when(j == 0)
    def _():
        h_sc[...] = h0_ref[...]

    # Small loop-invariant values, hoisted once per grid step (JAX does not
    # CSE broadcasts; keep them out of the rolled loop body).  Large matmul
    # operands are read from their refs directly inside the dots.
    valid = valid_ref[...] != 0.0                                    # (B, B*S)
    ids = jax.lax.broadcasted_iota(jnp.int32, (B, V), 1)             # (B, V)
    bih = bih_ref[...]                                               # (1, 3H)
    bhh = bhh_ref[...]                                               # (1, 3H)
    wgw = wgw_ref[...]                                               # (1, H) — multiplies w
    wgh = wgh_ref[...]                                               # (1, H) — multiplies hidden
    wgc = wgc_ref[...]                                               # (1, H) — multiplies context
    bg = bg_ref[0]                                                   # scalar (SMEM)

    def step(k, carry):
        h, w = carry            # (B, H) f32 each; dropout == identity in eval

        # ---------------- GRU cell, gates fused (r, z, n order) -------------
        gi = jnp.dot(w.astype(jnp.bfloat16), wih_ref[...],
                     preferred_element_type=jnp.float32) + bih        # (B, 3H)
        gh = jnp.dot(h.astype(jnp.bfloat16), whh_ref[...],
                     preferred_element_type=jnp.float32) + bhh        # (B, 3H)
        r = jax.nn.sigmoid(gi[:, :H] + gh[:, :H])
        z = jax.nn.sigmoid(gi[:, H:2 * H] + gh[:, H:2 * H])
        n = jnp.tanh(gi[:, 2 * H:] + r * gh[:, 2 * H:])
        h_new = (1.0 - z) * n + z * h                                 # (B, H) f32
        h_b16 = h_new.astype(jnp.bfloat16)

        # --------- masked attention over encoder history (M=B matmul) -------
        # scores[b, b'*S+s] = h_new[b] . enc[b', s]; only the own-block,
        # non-pad entries survive the mask, so softmax over B*S equals the
        # torch per-batch softmax over S (masked terms underflow to exact 0).
        scores = jnp.dot(h_b16, enc_t_ref[...],
                         preferred_element_type=jnp.float32)          # (B, B*S)
        attn_e = jnp.where(valid, scores, -1.0e9)
        attn_hist = _softmax_lastdim(attn_e)                          # (B, B*S) f32
        attn_h16 = attn_hist.astype(jnp.bfloat16)

        # ----------------- attention over the vocabulary (MXU) --------------
        attn_v = jnp.dot(h_b16, embT_ref[...],
                         preferred_element_type=jnp.float32)          # (B, V)
        attn_vocab = _softmax_lastdim(attn_v)

        # ------------------------------ context ------------------------------
        context = jnp.dot(attn_h16, enc_f_ref[...],
                          preferred_element_type=jnp.float32)         # (B, H)

        # -------- p_gen = sigmoid(cat([w, h, ctx]) @ w_gen^T + b), on VPU ----
        logit = jnp.sum(w * wgw + h_new * wgh + context * wgc,
                        axis=-1, keepdims=True) + bg                  # (B, 1)
        p_gen = jax.nn.sigmoid(logit)

        # --- copy distribution: scatter_add == attn @ one_hot(x) (M=B MXU) ---
        p_ctx = jnp.dot(attn_h16, onehot_ref[...],
                        preferred_element_type=jnp.float32)           # (B, V)

        p_final = p_gen * attn_vocab + (1.0 - p_gen) * p_ctx          # (B, V)
        out_ref[:, :, pl.ds(k, 1), :] = p_final[:, None, None, :]

        # -------- greedy argmax feedback: w <- embed(argmax(p_final)) --------
        pmax = jnp.max(p_final, axis=-1, keepdims=True)
        first_idx = jnp.min(jnp.where(p_final == pmax, ids, V),
                            axis=-1, keepdims=True)                   # first max
        onehot_next = (ids == first_idx).astype(jnp.bfloat16)         # (B, V)
        # TODO(synk): replace with a DMA row gather of emb (HBM) once indices
        # can be staged to SMEM robustly; kept as a bf16 MXU dot for reliable
        # Mosaic lowering.
        w_next = jnp.dot(onehot_next, emb_ref[...],
                         preferred_element_type=jnp.float32)          # (B, H)
        return h_new, w_next

    h_fin, _ = jax.lax.fori_loop(
        0, K, step, (h_sc[...], dec_ref[0].astype(jnp.float32)))
    h_sc[...] = h_fin            # carry hidden state to the next slot j


def value_generation_forward(x, decoder_input, encoder_output, hidden,
                             max_len, params):
    """JAX wrapper matching ValueGeneration.forward (teacher=None, eval mode)."""
    B, S = x.shape
    _, J, H = decoder_input.shape
    V = params["embed"].shape[0]
    f32, bf16 = jnp.float32, jnp.bfloat16
    BS = B * S

    # ---- one-time input / parameter prep (layout + dtype) ----
    x_i32 = x.astype(jnp.int32)
    x_flat = x_i32.reshape(BS)

    dec_jbh = jnp.transpose(decoder_input, (1, 0, 2)).astype(bf16)      # (J, B, H)
    enc_f = encoder_output.reshape(BS, H).astype(bf16)                  # (B*S, H)
    enc_t = jnp.transpose(encoder_output.reshape(BS, H)).astype(bf16)   # (H, B*S)
    h0 = hidden.astype(f32)                                             # (B, H)
    emb = params["embed"].astype(bf16)                                  # (V, H) feedback rows
    embT = jnp.transpose(params["embed"]).astype(bf16)                  # (H, V) vocab attention

    # loop-invariant flattened one-hot(x) for the copy mechanism (bf16: 0/1 exact)
    onehot_flat = (x_flat[:, None] ==
                   jnp.arange(V, dtype=jnp.int32)[None, :]).astype(bf16)   # (B*S, V)

    # block-diagonal (own-batch) AND not-pad validity mask, precomputed once
    pos_owner = jnp.arange(BS, dtype=jnp.int32) // S                    # batch owner of flat pos
    own = jnp.arange(B, dtype=jnp.int32)[:, None] == pos_owner[None, :]
    notpad = (x_flat != 0)[None, :]
    valid = (own & notpad).astype(f32)                                   # (B, B*S)

    # torch GRU stores weight_*_l0 as (3H, H) rows [r|z|n]; the cell computes
    # inp @ W^T, so transpose once and keep the gates concatenated.
    wih = jnp.transpose(params["gru_w_ih"]).astype(bf16)                 # (H, 3H)
    whh = jnp.transpose(params["gru_w_hh"]).astype(bf16)                 # (H, 3H)
    bih = params["gru_b_ih"].reshape(1, 3 * H).astype(f32)
    bhh = params["gru_b_hh"].reshape(1, 3 * H).astype(f32)
    # w_gen weight (1, 3H) split by the torch cat order [w, hidden, context]
    wg = params["w_gen_w"].astype(f32)
    wgw, wgh, wgc = wg[:, :H], wg[:, H:2 * H], wg[:, 2 * H:]
    bg = params["w_gen_b"].reshape(1).astype(f32)

    # ---- VMEM budget: actual resident block set, double-buffered, + slack ----
    def nbytes(shape, dtype):
        n = 1
        for d in shape:
            n *= d
        return n * jnp.dtype(dtype).itemsize

    block_bytes = (
        nbytes((B, BS), f32) + nbytes((1, B, H), bf16) + nbytes((H, BS), bf16)
        + nbytes((BS, H), bf16) + nbytes((B, H), f32) + nbytes((H, V), bf16)
        + nbytes((V, H), bf16) + nbytes((BS, V), bf16)
        + 2 * nbytes((H, 3 * H), bf16) + 2 * nbytes((1, 3 * H), f32)
        + 3 * nbytes((1, H), f32) + nbytes((B, 1, max_len, V), f32))
    vmem_limit = int(min(96 * 1024 * 1024,
                         max(32 * 1024 * 1024,
                             2 * block_bytes + nbytes((B, H), f32)
                             + 4 * 1024 * 1024)))

    grid_spec = pltpu.PrefetchScalarGridSpec(
        num_scalar_prefetch=0,
        grid=(J,),
        in_specs=[
            pl.BlockSpec((B, BS), lambda j: (0, 0)),            # validity mask
            pl.BlockSpec((1, B, H), lambda j: (j, 0, 0)),        # decoder_input slot j
            pl.BlockSpec((H, BS), lambda j: (0, 0)),             # enc^T (scores)
            pl.BlockSpec((BS, H), lambda j: (0, 0)),             # enc flat (context)
            pl.BlockSpec((B, H), lambda j: (0, 0)),              # hidden0
            pl.BlockSpec((H, V), lambda j: (0, 0)),              # embed^T (vocab attn)
            pl.BlockSpec((V, H), lambda j: (0, 0)),              # embed (feedback rows)
            pl.BlockSpec((BS, V), lambda j: (0, 0)),             # one_hot(x) flat
            pl.BlockSpec((H, 3 * H), lambda j: (0, 0)),          # GRU W_ih (fused gates)
            pl.BlockSpec((H, 3 * H), lambda j: (0, 0)),          # GRU W_hh (fused gates)
            pl.BlockSpec((1, 3 * H), lambda j: (0, 0)),          # GRU b_ih
            pl.BlockSpec((1, 3 * H), lambda j: (0, 0)),          # GRU b_hh
            pl.BlockSpec((1, H), lambda j: (0, 0)),              # w_gen rows for w
            pl.BlockSpec((1, H), lambda j: (0, 0)),              # w_gen rows for hidden
            pl.BlockSpec((1, H), lambda j: (0, 0)),              # w_gen rows for context
            pl.BlockSpec(memory_space=pltpu.MemorySpace.SMEM),   # w_gen bias (scalar)
        ],
        # result emitted directly in torch's return layout (B, J, max_len, V)
        out_specs=pl.BlockSpec((B, 1, max_len, V), lambda j: (0, j, 0, 0)),
        scratch_shapes=[pltpu.VMEM((B, H), jnp.float32)],        # hidden carry across j
    )

    out = pl.pallas_call(
        _value_gen_kernel,
        out_shape=jax.ShapeDtypeStruct((B, J, max_len, V), jnp.float32),
        grid_spec=grid_spec,
        compiler_params=pltpu.CompilerParams(
            # torch carries `hidden` across slots j (never reset) -> the j
            # axis is a true recurrence and must stay sequential.
            dimension_semantics=("arbitrary",),
            vmem_limit_bytes=vmem_limit),
    )(valid, dec_jbh, enc_t, enc_f, h0, embT, emb, onehot_flat,
      wih, whh, bih, bhh, wgw, wgh, wgc, bg)

    return out                                                   # (B, J, max_len, V)


if __name__ == "__main__":
    # small shapes implied by the forward pass
    B, S, H, V = 2, 8, 32, 256          # batch, encoder seq len, hidden, vocab
    J, MAX_LEN = 2, 3                   # n_update slots, decode length
    INIT_RANGE = 0.02                   # config.initializer_range

    key = jax.random.PRNGKey(0)
    ks = jax.random.split(key, 11)

    x = jax.random.randint(ks[0], (B, S), 0, V).astype(jnp.int32)
    x = x.at[:, -1].set(0)              # ensure the pad-mask path is exercised
    decoder_input = jax.random.normal(ks[1], (B, J, H), jnp.float32)
    encoder_output = jax.random.normal(ks[2], (B, S, H), jnp.float32)
    hidden = jax.random.normal(ks[3], (B, H), jnp.float32)

    # parameters in torch layout (embed (V,H); GRU weight_* (3H,H); Linear (1,3H))
    params = {
        "embed":    INIT_RANGE * jax.random.normal(ks[4], (V, H), jnp.float32),
        "gru_w_ih": INIT_RANGE * jax.random.normal(ks[5], (3 * H, H), jnp.float32),
        "gru_w_hh": INIT_RANGE * jax.random.normal(ks[6], (3 * H, H), jnp.float32),
        "gru_b_ih": 0.1 * jax.random.normal(ks[7], (3 * H,), jnp.float32),
        "gru_b_hh": 0.1 * jax.random.normal(ks[8], (3 * H,), jnp.float32),
        "w_gen_w":  0.1 * jax.random.normal(ks[9], (1, 3 * H), jnp.float32),
        "w_gen_b":  0.1 * jax.random.normal(ks[10], (1,), jnp.float32),
    }

    out = value_generation_forward(x, decoder_input, encoder_output, hidden,
                                   MAX_LEN, params)
    out = jax.block_until_ready(out)

    assert out.shape == (B, J, MAX_LEN, V), out.shape
    assert bool(jnp.all(jnp.isfinite(out)))
    # each p_final is a convex combination of two probability distributions, so
    # every (b, j, k) row must sum to ~1 (bf16 operands + approx reciprocal
    # introduce ~1e-3-level deviation).
    row_sums = jnp.sum(out, axis=-1)
    assert bool(jnp.all(jnp.abs(row_sums - 1.0) < 1e-2)), row_sums
    print("KERNEL_OK")
</pallas_src>

<mosaic_0001>
module attributes {stable_mosaic.version = 11 : i64} {
  func.func @_value_gen_kernel(%arg0: i32, %arg1: memref<2x16xf32, #tpu.memory_space<vmem>>, %arg2: memref<1x2x32xbf16, #tpu.memory_space<vmem>>, %arg3: memref<32x16xbf16, #tpu.memory_space<vmem>>, %arg4: memref<16x32xbf16, #tpu.memory_space<vmem>>, %arg5: memref<2x32xf32, #tpu.memory_space<vmem>>, %arg6: memref<32x256xbf16, #tpu.memory_space<vmem>>, %arg7: memref<256x32xbf16, #tpu.memory_space<vmem>>, %arg8: memref<16x256xbf16, #tpu.memory_space<vmem>>, %arg9: memref<32x96xbf16, #tpu.memory_space<vmem>>, %arg10: memref<32x96xbf16, #tpu.memory_space<vmem>>, %arg11: memref<1x96xf32, #tpu.memory_space<vmem>>, %arg12: memref<1x96xf32, #tpu.memory_space<vmem>>, %arg13: memref<1x32xf32, #tpu.memory_space<vmem>>, %arg14: memref<1x32xf32, #tpu.memory_space<vmem>>, %arg15: memref<1x32xf32, #tpu.memory_space<vmem>>, %arg16: memref<1xf32, #tpu.memory_space<smem>>, %arg17: memref<2x1x3x256xf32, #tpu.memory_space<vmem>>, %arg18: memref<2x32xf32, #tpu.memory_space<vmem>>) attributes {dimension_semantics = [#tpu.dimension_semantics<arbitrary>], iteration_bounds = array<i64: 2>, scalar_prefetch = 0 : i64, scratch_operands = 1 : i64, tpu.core_type = #tpu.core_type<tc>, window_params = [{pipeline_mode = #tpu.pipeline_mode<synchronous>, transform_indices = @transform_0, window_bounds = array<i64: 2, 16>}, {transform_indices = @transform_1, window_bounds = array<i64: 1, 2, 32>}, {pipeline_mode = #tpu.pipeline_mode<synchronous>, transform_indices = @transform_2, window_bounds = array<i64: 32, 16>}, {pipeline_mode = #tpu.pipeline_mode<synchronous>, transform_indices = @transform_3, window_bounds = array<i64: 16, 32>}, {pipeline_mode = #tpu.pipeline_mode<synchronous>, transform_indices = @transform_4, window_bounds = array<i64: 2, 32>}, {pipeline_mode = #tpu.pipeline_mode<synchronous>, transform_indices = @transform_5, window_bounds = array<i64: 32, 256>}, {pipeline_mode = #tpu.pipeline_mode<synchronous>, transform_indices = @transform_6, window_bounds = array<i64: 256, 32>}, {pipeline_mode = #tpu.pipeline_mode<synchronous>, transform_indices = @transform_7, window_bounds = array<i64: 16, 256>}, {pipeline_mode = #tpu.pipeline_mode<synchronous>, transform_indices = @transform_8, window_bounds = array<i64: 32, 96>}, {pipeline_mode = #tpu.pipeline_mode<synchronous>, transform_indices = @transform_9, window_bounds = array<i64: 32, 96>}, {pipeline_mode = #tpu.pipeline_mode<synchronous>, transform_indices = @transform_10, window_bounds = array<i64: 1, 96>}, {pipeline_mode = #tpu.pipeline_mode<synchronous>, transform_indices = @transform_11, window_bounds = array<i64: 1, 96>}, {pipeline_mode = #tpu.pipeline_mode<synchronous>, transform_indices = @transform_12, window_bounds = array<i64: 1, 32>}, {pipeline_mode = #tpu.pipeline_mode<synchronous>, transform_indices = @transform_13, window_bounds = array<i64: 1, 32>}, {pipeline_mode = #tpu.pipeline_mode<synchronous>, transform_indices = @transform_14, window_bounds = array<i64: 1, 32>}, {transform_indices = @transform_15, window_bounds = array<i64: 1>}, {transform_indices = @transform_16, window_bounds = array<i64: 2, 1, 3, 256>}]} {
    %c0_i32 = arith.constant 0 : i32
    %0 = arith.cmpi eq, %arg0, %c0_i32 : i32
    %1 = arith.extui %0 : i1 to i32
    %c0_i32_0 = arith.constant 0 : i32
    %2 = arith.cmpi ne, %1, %c0_i32_0 : i32
    scf.if %2 {
      %c0_22 = arith.constant 0 : index
      %c0_23 = arith.constant 0 : index
      %20 = vector.load %arg5[%c0_22, %c0_23] : memref<2x32xf32, #tpu.memory_space<vmem>>, vector<2x32xf32>
      %c0_24 = arith.constant 0 : index
      %c0_25 = arith.constant 0 : index
      %21 = vector.load %arg18[%c0_24, %c0_25] : memref<2x32xf32, #tpu.memory_space<vmem>>, vector<2x32xf32>
      tpu.vector_store %arg18[%c0_24, %c0_25], %20 {strides = array<i32>} : memref<2x32xf32, #tpu.memory_space<vmem>>, vector<2x32xf32>,
    } else {
    }
    %c0 = arith.constant 0 : index
    %c0_1 = arith.constant 0 : index
    %3 = vector.load %arg1[%c0, %c0_1] : memref<2x16xf32, #tpu.memory_space<vmem>>, vector<2x16xf32>
    %cst = arith.constant 0.000000e+00 : f32
    %4 = vector.broadcast %cst : f32 to vector<2x16xf32>
    %5 = arith.cmpf one, %3, %4 : vector<2x16xf32>
    %6 = tpu.iota {dimensions = array<i32: 1>} : vector<2x256xi32>
    %c0_2 = arith.constant 0 : index
    %c0_3 = arith.constant 0 : index
    %7 = vector.load %arg11[%c0_2, %c0_3] : memref<1x96xf32, #tpu.memory_space<vmem>>, vector<1x96xf32>
    %c0_4 = arith.constant 0 : index
    %c0_5 = arith.constant 0 : index
    %8 = vector.load %arg12[%c0_4, %c0_5] : memref<1x96xf32, #tpu.memory_space<vmem>>, vector<1x96xf32>
    %c0_6 = arith.constant 0 : index
    %c0_7 = arith.constant 0 : index
    %9 = vector.load %arg13[%c0_6, %c0_7] : memref<1x32xf32, #tpu.memory_space<vmem>>, vector<1x32xf32>
    %c0_8 = arith.constant 0 : index
    %c0_9 = arith.constant 0 : index
    %10 = vector.load %arg14[%c0_8, %c0_9] : memref<1x32xf32, #tpu.memory_space<vmem>>, vector<1x32xf32>
    %c0_10 = arith.constant 0 : index
    %c0_11 = arith.constant 0 : index
    %11 = vector.load %arg15[%c0_10, %c0_11] : memref<1x32xf32, #tpu.memory_space<vmem>>, vector<1x32xf32>
    %c0_12 = arith.constant 0 : index
    %12 = memref.load %arg16[%c0_12] : memref<1xf32, #tpu.memory_space<smem>>
    %c0_13 = arith.constant 0 : index
    %c0_14 = arith.constant 0 : index
    %13 = vector.load %arg18[%c0_13, %c0_14] : memref<2x32xf32, #tpu.memory_space<vmem>>, vector<2x32xf32>
    %c0_15 = arith.constant 0 : index
    %c0_16 = arith.constant 0 : index
    %c0_17 = arith.constant 0 : index
    %14 = vector.load %arg2[%c0_15, %c0_16, %c0_17] : memref<1x2x32xbf16, #tpu.memory_space<vmem>>, vector<1x2x32xbf16>
    %15 = vector.shape_cast %14 : vector<1x2x32xbf16> to vector<2x32xbf16>
    %16 = arith.extf %15 : vector<2x32xbf16> to vector<2x32xf32>
    %c0_i32_18 = arith.constant 0 : i32
    %c3_i32 = arith.constant 3 : i32
    %17 = arith.addi %c0_i32_18, %c3_i32 : i32
    %c1_i32 = arith.constant 1 : i32
    %18:2 = scf.for %arg19 = %c0_i32_18 to %17 step %c1_i32 iter_args(%arg20 = %13, %arg21 = %16) -> (vector<2x32xf32>, vector<2x32xf32>)  : i32 {
      %20 = arith.truncf %arg21 : vector<2x32xf32> to vector<2x32xbf16>
      %c0_22 = arith.constant 0 : index
      %c0_23 = arith.constant 0 : index
      %21 = vector.load %arg9[%c0_22, %c0_23] : memref<32x96xbf16, #tpu.memory_space<vmem>>, vector<32x96xbf16>
      %cst_24 = arith.constant dense<0.000000e+00> : vector<2x96xf32>
      %22 = tpu.matmul %20, %21, %cst_24 {dimension_numbers = #tpu.dot_dimension_numbers<[1], [0], [0], [1], [0, 0, 1, 1], [], []>} : vector<2x32xbf16>, vector<32x96xbf16>, vector<2x96xf32> -> vector<2x96xf32>
      %23 = vector.broadcast %7 : vector<1x96xf32> to vector<2x96xf32>
      %24 = arith.addf %22, %23 : vector<2x96xf32>
      %25 = arith.truncf %arg20 : vector<2x32xf32> to vector<2x32xbf16>
      %c0_25 = arith.constant 0 : index
      %c0_26 = arith.constant 0 : index
      %26 = vector.load %arg10[%c0_25, %c0_26] : memref<32x96xbf16, #tpu.memory_space<vmem>>, vector<32x96xbf16>
      %cst_27 = arith.constant dense<0.000000e+00> : vector<2x96xf32>
      %27 = tpu.matmul %25, %26, %cst_27 {dimension_numbers = #tpu.dot_dimension_numbers<[1], [0], [0], [1], [0, 0, 1, 1], [], []>} : vector<2x32xbf16>, vector<32x96xbf16>, vector<2x96xf32> -> vector<2x96xf32>
      %28 = vector.broadcast %8 : vector<1x96xf32> to vector<2x96xf32>
      %29 = arith.addf %27, %28 : vector<2x96xf32>
      %30 = vector.extract_strided_slice %24 {offsets = [0, 0], sizes = [2, 32], strides = [1, 1]} : vector<2x96xf32> to vector<2x32xf32>
      %31 = vector.extract_strided_slice %29 {offsets = [0, 0], sizes = [2, 32], strides = [1, 1]} : vector<2x96xf32> to vector<2x32xf32>
      %32 = arith.addf %30, %31 : vector<2x32xf32>
      %33 = arith.negf %32 : vector<2x32xf32>
      %34 = math.exp %33 : vector<2x32xf32>
      %cst_28 = arith.constant 1.000000e+00 : f32
      %35 = vector.broadcast %cst_28 : f32 to vector<2x32xf32>
      %36 = arith.addf %35, %34 : vector<2x32xf32>
      %37 = arith.divf %35, %36 : vector<2x32xf32>
      %38 = vector.extract_strided_slice %24 {offsets = [0, 32], sizes = [2, 32], strides = [1, 1]} : vector<2x96xf32> to vector<2x32xf32>
      %39 = vector.extract_strided_slice %29 {offsets = [0, 32], sizes = [2, 32], strides = [1, 1]} : vector<2x96xf32> to vector<2x32xf32>
      %40 = arith.addf %38, %39 : vector<2x32xf32>
      %41 = arith.negf %40 : vector<2x32xf32>
      %42 = math.exp %41 : vector<2x32xf32>
      %cst_29 = arith.constant 1.000000e+00 : f32
      %43 = vector.broadcast %cst_29 : f32 to vector<2x32xf32>
      %44 = arith.addf %43, %42 : vector<2x32xf32>
      %45 = arith.divf %43, %44 : vector<2x32xf32>
      %46 = vector.extract_strided_slice %24 {offsets = [0, 64], sizes = [2, 32], strides = [1, 1]} : vector<2x96xf32> to vector<2x32xf32>
      %47 = vector.extract_strided_slice %29 {offsets = [0, 64], sizes = [2, 32], strides = [1, 1]} : vector<2x96xf32> to vector<2x32xf32>
      %48 = arith.mulf %37, %47 : vector<2x32xf32>
      %49 = arith.addf %46, %48 : vector<2x32xf32>
      %50 = math.tanh %49 : vector<2x32xf32>
      %cst_30 = arith.constant 1.000000e+00 : f32
      %51 = vector.broadcast %cst_30 : f32 to vector<2x32xf32>
      %52 = arith.subf %51, %45 : vector<2x32xf32>
      %53 = arith.mulf %52, %50 : vector<2x32xf32>
      %54 = arith.mulf %45, %arg20 : vector<2x32xf32>
      %55 = arith.addf %53, %54 : vector<2x32xf32>
      %56 = arith.truncf %55 : vector<2x32xf32> to vector<2x32xbf16>
      %c0_31 = arith.constant 0 : index
      %c0_32 = arith.constant 0 : index
      %57 = vector.load %arg3[%c0_31, %c0_32] : memref<32x16xbf16, #tpu.memory_space<vmem>>, vector<32x16xbf16>
      %cst_33 = arith.constant dense<0.000000e+00> : vector<2x16xf32>
      %58 = tpu.matmul %56, %57, %cst_33 {dimension_numbers = #tpu.dot_dimension_numbers<[1], [0], [0], [1], [0, 0, 1, 1], [], []>} : vector<2x32xbf16>, vector<32x16xbf16>, vector<2x16xf32> -> vector<2x16xf32>
      %cst_34 = arith.constant -1.000000e+09 : f32
      %59 = vector.broadcast %cst_34 : f32 to vector<2x16xf32>
      %60 = arith.select %5, %58, %59 : vector<2x16xi1>, vector<2x16xf32>
      %cst_35 = arith.constant dense<0xFF800000> : vector<2xf32>
      %61 = vector.multi_reduction <maximumf>, %60, %cst_35 [1] : vector<2x16xf32> to vector<2xf32>
      %62 = vector.shape_cast %61 : vector<2xf32> to vector<2x1xf32>
      %63 = vector.broadcast %62 : vector<2x1xf32> to vector<2x16xf32>
      %64 = arith.subf %60, %63 : vector<2x16xf32>
      %65 = math.exp %64 : vector<2x16xf32>
      %cst_36 = arith.constant dense<0.000000e+00> : vector<2xf32>
      %66 = vector.multi_reduction <add>, %65, %cst_36 [1] : vector<2x16xf32> to vector<2xf32>
      %67 = vector.shape_cast %66 : vector<2xf32> to vector<2x1xf32>
      %68 = tpu.reciprocal %67 {approx = true} : vector<2x1xf32> -> vector<2x1xf32>
      %69 = vector.broadcast %68 : vector<2x1xf32> to vector<2x16xf32>
      %70 = arith.mulf %65, %69 : vector<2x16xf32>
      %71 = arith.truncf %70 : vector<2x16xf32> to vector<2x16xbf16>
      %c0_37 = arith.constant 0 : index
      %c0_38 = arith.constant 0 : index
      %72 = vector.load %arg6[%c0_37, %c0_38] : memref<32x256xbf16, #tpu.memory_space<vmem>>, vector<32x256xbf16>
      %cst_39 = arith.constant dense<0.000000e+00> : vector<2x256xf32>
      %73 = tpu.matmul %56, %72, %cst_39 {dimension_numbers = #tpu.dot_dimension_numbers<[1], [0], [0], [1], [0, 0, 1, 1], [], []>} : vector<2x32xbf16>, vector<32x256xbf16>, vector<2x256xf32> -> vector<2x256xf32>
      %cst_40 = arith.constant dense<0xFF800000> : vector<2xf32>
      %74 = vector.multi_reduction <maximumf>, %73, %cst_40 [1] : vector<2x256xf32> to vector<2xf32>
      %75 = vector.shape_cast %74 : vector<2xf32> to vector<2x1xf32>
      %76 = vector.broadcast %75 : vector<2x1xf32> to vector<2x256xf32>
      %77 = arith.subf %73, %76 : vector<2x256xf32>
      %78 = math.exp %77 : vector<2x256xf32>
      %cst_41 = arith.constant dense<0.000000e+00> : vector<2xf32>
      %79 = vector.multi_reduction <add>, %78, %cst_41 [1] : vector<2x256xf32> to vector<2xf32>
      %80 = vector.shape_cast %79 : vector<2xf32> to vector<2x1xf32>
      %81 = tpu.reciprocal %80 {approx = true} : vector<2x1xf32> -> vector<2x1xf32>
      %82 = vector.broadcast %81 : vector<2x1xf32> to vector<2x256xf32>
      %83 = arith.mulf %78, %82 : vector<2x256xf32>
      %c0_42 = arith.constant 0 : index
      %c0_43 = arith.constant 0 : index
      %84 = vector.load %arg4[%c0_42, %c0_43] : memref<16x32xbf16, #tpu.memory_space<vmem>>, vector<16x32xbf16>
      %cst_44 = arith.constant dense<0.000000e+00> : vector<2x32xf32>
      %85 = tpu.matmul %71, %84, %cst_44 {dimension_numbers = #tpu.dot_dimension_numbers<[1], [0], [0], [1], [0, 0, 1, 1], [], []>} : vector<2x16xbf16>, vector<16x32xbf16>, vector<2x32xf32> -> vector<2x32xf32>
      %86 = vector.broadcast %9 : vector<1x32xf32> to vector<2x32xf32>
      %87 = arith.mulf %arg21, %86 : vector<2x32xf32>
      %88 = vector.broadcast %10 : vector<1x32xf32> to vector<2x32xf32>
      %89 = arith.mulf %55, %88 : vector<2x32xf32>
      %90 = arith.addf %87, %89 : vector<2x32xf32>
      %91 = vector.broadcast %11 : vector<1x32xf32> to vector<2x32xf32>
      %92 = arith.mulf %85, %91 : vector<2x32xf32>
      %93 = arith.addf %90, %92 : vector<2x32xf32>
      %cst_45 = arith.constant dense<0.000000e+00> : vector<2xf32>
      %94 = vector.multi_reduction <add>, %93, %cst_45 [1] : vector<2x32xf32> to vector<2xf32>
      %95 = vector.shape_cast %94 : vector<2xf32> to vector<2x1xf32>
      %96 = vector.broadcast %12 : f32 to vector<2x1xf32>
      %97 = arith.addf %95, %96 : vector<2x1xf32>
      %98 = arith.negf %97 : vector<2x1xf32>
      %99 = math.exp %98 : vector<2x1xf32>
      %cst_46 = arith.constant 1.000000e+00 : f32
      %100 = vector.broadcast %cst_46 : f32 to vector<2x1xf32>
      %101 = arith.addf %100, %99 : vector<2x1xf32>
      %102 = arith.divf %100, %101 : vector<2x1xf32>
      %c0_47 = arith.constant 0 : index
      %c0_48 = arith.constant 0 : index
      %103 = vector.load %arg8[%c0_47, %c0_48] : memref<16x256xbf16, #tpu.memory_space<vmem>>, vector<16x256xbf16>
      %cst_49 = arith.constant dense<0.000000e+00> : vector<2x256xf32>
      %104 = tpu.matmul %71, %103, %cst_49 {dimension_numbers = #tpu.dot_dimension_numbers<[1], [0], [0], [1], [0, 0, 1, 1], [], []>} : vector<2x16xbf16>, vector<16x256xbf16>, vector<2x256xf32> -> vector<2x256xf32>
      %105 = vector.broadcast %102 : vector<2x1xf32> to vector<2x256xf32>
      %106 = arith.mulf %105, %83 : vector<2x256xf32>
      %cst_50 = arith.constant 1.000000e+00 : f32
      %107 = vector.broadcast %cst_50 : f32 to vector<2x1xf32>
      %108 = arith.subf %107, %102 : vector<2x1xf32>
      %109 = vector.broadcast %108 : vector<2x1xf32> to vector<2x256xf32>
      %110 = arith.mulf %109, %104 : vector<2x256xf32>
      %111 = arith.addf %106, %110 : vector<2x256xf32>
      %112 = vector.shape_cast %111 : vector<2x256xf32> to vector<2x1x1x256xf32>
      %c0_51 = arith.constant 0 : index
      %c0_52 = arith.constant 0 : index
      %113 = arith.index_cast %arg19 : i32 to index
      %c0_53 = arith.constant 0 : index
      %114 = vector.load %arg17[%c0_51, %c0_52, %113, %c0_53] : memref<2x1x3x256xf32, #tpu.memory_space<vmem>>, vector<2x1x1x256xf32>
      tpu.vector_store %arg17[%c0_51, %c0_52, %113, %c0_53], %112 {strides = array<i32>} : memref<2x1x3x256xf32, #tpu.memory_space<vmem>>, vector<2x1x1x256xf32>,
      %cst_54 = arith.constant dense<0xFF800000> : vector<2xf32>
      %115 = vector.multi_reduction <maximumf>, %111, %cst_54 [1] : vector<2x256xf32> to vector<2xf32>
      %116 = vector.shape_cast %115 : vector<2xf32> to vector<2x1xf32>
      %117 = vector.broadcast %116 : vector<2x1xf32> to vector<2x256xf32>
      %118 = arith.cmpf oeq, %111, %117 : vector<2x256xf32>
      %c256_i32 = arith.constant 256 : i32
      %119 = vector.broadcast %c256_i32 : i32 to vector<2x256xi32>
      %120 = arith.select %118, %6, %119 : vector<2x256xi1>, vector<2x256xi32>
      %cst_55 = arith.constant dense<2147483647> : vector<2xi32>
      %121 = vector.multi_reduction <minsi>, %120, %cst_55 [1] : vector<2x256xi32> to vector<2xi32>
      %122 = vector.shape_cast %121 : vector<2xi32> to vector<2x1xi32>
      %123 = vector.broadcast %122 : vector<2x1xi32> to vector<2x256xi32>
      %124 = arith.cmpi eq, %6, %123 : vector<2x256xi32>
      %125 = arith.extui %124 : vector<2x256xi1> to vector<2x256xi32>
      %126 = arith.sitofp %125 : vector<2x256xi32> to vector<2x256xf32>
      %127 = arith.truncf %126 : vector<2x256xf32> to vector<2x256xbf16>
      %c0_56 = arith.constant 0 : index
      %c0_57 = arith.constant 0 : index
      %128 = vector.load %arg7[%c0_56, %c0_57] : memref<256x32xbf16, #tpu.memory_space<vmem>>, vector<256x32xbf16>
      %cst_58 = arith.constant dense<0.000000e+00> : vector<2x32xf32>
      %129 = tpu.matmul %127, %128, %cst_58 {dimension_numbers = #tpu.dot_dimension_numbers<[1], [0], [0], [1], [0, 0, 1, 1], [], []>} : vector<2x256xbf16>, vector<256x32xbf16>, vector<2x32xf32> -> vector<2x32xf32>
      scf.yield %55, %129 : vector<2x32xf32>, vector<2x32xf32>
    }
    %c3_i32_19 = arith.constant 3 : i32
    %c0_20 = arith.constant 0 : index
    %c0_21 = arith.constant 0 : index
    %19 = vector.load %arg18[%c0_20, %c0_21] : memref<2x32xf32, #tpu.memory_space<vmem>>, vector<2x32xf32>
    tpu.vector_store %arg18[%c0_20, %c0_21], %18#0 {strides = array<i32>} : memref<2x32xf32, #tpu.memory_space<vmem>>, vector<2x32xf32>,
    return
  }
  func.func @transform_0(%arg0: i32) -> (i32, i32) {
    %c0_i32 = arith.constant 0 : i32
    %c0_i32_0 = arith.constant 0 : i32
    %c0_i32_1 = arith.constant 0 : i32
    return %c0_i32, %c0_i32_0 : i32, i32
  }
  func.func @transform_1(%arg0: i32) -> (i32, i32, i32) {
    %c0_i32 = arith.constant 0 : i32
    %c0_i32_0 = arith.constant 0 : i32
    %c0_i32_1 = arith.constant 0 : i32
    return %arg0, %c0_i32, %c0_i32_0 : i32, i32, i32
  }
  func.func @transform_2(%arg0: i32) -> (i32, i32) {
    %c0_i32 = arith.constant 0 : i32
    %c0_i32_0 = arith.constant 0 : i32
    %c0_i32_1 = arith.constant 0 : i32
    return %c0_i32, %c0_i32_0 : i32, i32
  }
  func.func @transform_3(%arg0: i32) -> (i32, i32) {
    %c0_i32 = arith.constant 0 : i32
    %c0_i32_0 = arith.constant 0 : i32
    %c0_i32_1 = arith.constant 0 : i32
    return %c0_i32, %c0_i32_0 : i32, i32
  }
  func.func @transform_4(%arg0: i32) -> (i32, i32) {
    %c0_i32 = arith.constant 0 : i32
    %c0_i32_0 = arith.constant 0 : i32
    %c0_i32_1 = arith.constant 0 : i32
    return %c0_i32, %c0_i32_0 : i32, i32
  }
  func.func @transform_5(%arg0: i32) -> (i32, i32) {
    %c0_i32 = arith.constant 0 : i32
    %c0_i32_0 = arith.constant 0 : i32
    %c0_i32_1 = arith.constant 0 : i32
    return %c0_i32, %c0_i32_0 : i32, i32
  }
  func.func @transform_6(%arg0: i32) -> (i32, i32) {
    %c0_i32 = arith.constant 0 : i32
    %c0_i32_0 = arith.constant 0 : i32
    %c0_i32_1 = arith.constant 0 : i32
    return %c0_i32, %c0_i32_0 : i32, i32
  }
  func.func @transform_7(%arg0: i32) -> (i32, i32) {
    %c0_i32 = arith.constant 0 : i32
    %c0_i32_0 = arith.constant 0 : i32
    %c0_i32_1 = arith.constant 0 : i32
    return %c0_i32, %c0_i32_0 : i32, i32
  }
  func.func @transform_8(%arg0: i32) -> (i32, i32) {
    %c0_i32 = arith.constant 0 : i32
    %c0_i32_0 = arith.constant 0 : i32
    %c0_i32_1 = arith.constant 0 : i32
    return %c0_i32, %c0_i32_0 : i32, i32
  }
  func.func @transform_9(%arg0: i32) -> (i32, i32) {
    %c0_i32 = arith.constant 0 : i32
    %c0_i32_0 = arith.constant 0 : i32
    %c0_i32_1 = arith.constant 0 : i32
    return %c0_i32, %c0_i32_0 : i32, i32
  }
  func.func @transform_10(%arg0: i32) -> (i32, i32) {
    %c0_i32 = arith.constant 0 : i32
    %c0_i32_0 = arith.constant 0 : i32
    %c0_i32_1 = arith.constant 0 : i32
    return %c0_i32, %c0_i32_0 : i32, i32
  }
  func.func @transform_11(%arg0: i32) -> (i32, i32) {
    %c0_i32 = arith.constant 0 : i32
    %c0_i32_0 = arith.constant 0 : i32
    %c0_i32_1 = arith.constant 0 : i32
    return %c0_i32, %c0_i32_0 : i32, i32
  }
  func.func @transform_12(%arg0: i32) -> (i32, i32) {
    %c0_i32 = arith.constant 0 : i32
    %c0_i32_0 = arith.constant 0 : i32
    %c0_i32_1 = arith.constant 0 : i32
    return %c0_i32, %c0_i32_0 : i32, i32
  }
  func.func @transform_13(%arg0: i32) -> (i32, i32) {
    %c0_i32 = arith.constant 0 : i32
    %c0_i32_0 = arith.constant 0 : i32
    %c0_i32_1 = arith.constant 0 : i32
    return %c0_i32, %c0_i32_0 : i32, i32
  }
  func.func @transform_14(%arg0: i32) -> (i32, i32) {
    %c0_i32 = arith.constant 0 : i32
    %c0_i32_0 = arith.constant 0 : i32
    %c0_i32_1 = arith.constant 0 : i32
    return %c0_i32, %c0_i32_0 : i32, i32
  }
  func.func @transform_15(%arg0: i32) -> i32 {
    %c0_i32 = arith.constant 0 : i32
    %c0_i32_0 = arith.constant 0 : i32
    return %c0_i32 : i32
  }
  func.func @transform_16(%arg0: i32) -> (i32, i32, i32, i32) {
    %c0_i32 = arith.constant 0 : i32
    %c0_i32_0 = arith.constant 0 : i32
    %c0_i32_1 = arith.constant 0 : i32
    %c0_i32_2 = arith.constant 0 : i32
    return %c0_i32, %arg0, %c0_i32_0, %c0_i32_1 : i32, i32, i32, i32
  }
}

</mosaic_0001>

<llo_original>
// kernel: tpu_custom_call.1
$region0: #{tpu_custom_call.1}
  #allocation0 [shape = 'u32[]', space=smem, size = 0x4, offset = 0x4, fixed_abs, tag = 'smem constant byte address 0x4 - core index']
  #allocation1 [shape = 'u32[144,128]{1,0:T(1,128)}', space=vmem, size = 0x12000, scoped, tag = 'internal scratch']
  #allocation2 [shape = 'f32[2,32]{1,0:T(2,128)}', space=vmem, size = 0x400, scoped, tag = 'scratch operand']
  #allocation3 [shape = 'f32[1]{0:T(128)S(6)}', space=smem, size = 0x200, scoped, tag = 'scoped memory for tpu_custom_call.1']
  %s0 = inlined_call_operand.vmem [shape: f32[2,16], index: 0, kind: input, shape index: {}]
  %s1 = inlined_call_operand.vmem [shape: bf16[2,2,32], index: 1, kind: input, shape index: {}]
  %s2 = inlined_call_operand.vmem [shape: bf16[32,16], index: 2, kind: input, shape index: {}]
  %s3 = inlined_call_operand.vmem [shape: bf16[16,32], index: 3, kind: input, shape index: {}]
  %s4 = inlined_call_operand.vmem [shape: f32[2,32], index: 4, kind: input, shape index: {}]
  %s5 = inlined_call_operand.vmem [shape: bf16[32,256], index: 5, kind: input, shape index: {}]
  %s6 = inlined_call_operand.vmem [shape: bf16[256,32], index: 6, kind: input, shape index: {}]
  %s7 = inlined_call_operand.vmem [shape: bf16[16,256], index: 7, kind: input, shape index: {}]
  %s8 = inlined_call_operand.vmem [shape: bf16[32,96], index: 8, kind: input, shape index: {}]
  %s9 = inlined_call_operand.vmem [shape: bf16[32,96], index: 9, kind: input, shape index: {}]
  %s10 = inlined_call_operand.vmem [shape: f32[1,96], index: 10, kind: input, shape index: {}]
  %s11 = inlined_call_operand.vmem [shape: f32[1,96], index: 11, kind: input, shape index: {}]
  %s12 = inlined_call_operand.vmem [shape: f32[1,32], index: 12, kind: input, shape index: {}]
  %s13 = inlined_call_operand.vmem [shape: f32[1,32], index: 13, kind: input, shape index: {}]
  %s14 = inlined_call_operand.vmem [shape: f32[1,32], index: 14, kind: input, shape index: {}]
  %s15 = inlined_call_operand.<no memory space> [shape: f32[1], index: 15, kind: input, shape index: {}]
  %s16 = inlined_call_operand.vmem [shape: f32[2,2,3,256], index: 16, kind: output, shape index: {}]
  %s17 = sld [smem:[#allocation0]]
  $region142: #{tpu_custom_call.1} parent=0
    _
  %s19 = ssub.s32 1, %s17
  %s20 = scalar_select 0, %s19, %s17
  %21 = sst [smem:[#allocation3]] %s15
  $region1: #{tpu_custom_call.1} parent=0
    #allocation4 [shape = 'u8[16384]{0}', space=vmem, size = 0x4000, scoped, tag = 'output window, operand 0']
    loop: start=0, step=1, limit=4
    $region2: #{tpu_custom_call.1} parent=1 // loop_pre_header
      _
    $region3: #{tpu_custom_call.1} parent=1 // loop_header
      %s23 = sphi 0, %s27
      %p24 = scmp.ge.s32.totalorder %s23, 4
      %s31 = sphi 0, %s31
      %s33 = sphi 0, %s31
      %s34 = sphi 0, %s33
      %s48 = sphi 0, %s34
      %s54 = sphi 0, %s56
      %s57 = sphi 0, %s54
      %s58 = sphi 0, %s57
      %s74 = sphi 0, %s58
      %s78 = sphi 0, %s78
      %s80 = sphi 0, %s78
      %s81 = sphi 0, %s80
      %s95 = sphi 0, %s81
      %s99 = sphi 0, %s99
      %s101 = sphi 0, %s99
      %s102 = sphi 0, %s101
      %s116 = sphi 0, %s102
      %s120 = sphi 0, %s120
      %s122 = sphi 0, %s120
      %s123 = sphi 0, %s122
      %s137 = sphi 0, %s123
      %s141 = sphi 0, %s141
      %s143 = sphi 0, %s141
      %s144 = sphi 0, %s143
      %s158 = sphi 0, %s144
      %s162 = sphi 0, %s162
      %s164 = sphi 0, %s162
      %s165 = sphi 0, %s164
      %s179 = sphi 0, %s165
      %s183 = sphi 0, %s183
      %s185 = sphi 0, %s183
      %s186 = sphi 0, %s185
      %s200 = sphi 0, %s186
      %s204 = sphi 0, %s204
      %s206 = sphi 0, %s204
      %s207 = sphi 0, %s206
      %s221 = sphi 0, %s207
      %s225 = sphi 0, %s225
      %s227 = sphi 0, %s225
      %s228 = sphi 0, %s227
      %s242 = sphi 0, %s228
      %s246 = sphi 0, %s246
      %s248 = sphi 0, %s246
      %s249 = sphi 0, %s248
      %s263 = sphi 0, %s249
      %s267 = sphi 0, %s267
      %s269 = sphi 0, %s267
      %s270 = sphi 0, %s269
      %s284 = sphi 0, %s270
      %s288 = sphi 0, %s288
      %s290 = sphi 0, %s288
      %s291 = sphi 0, %s290
      %s305 = sphi 0, %s291
      %s309 = sphi 0, %s309
      %s311 = sphi 0, %s309
      %s312 = sphi 0, %s311
      %s326 = sphi 0, %s312
      %s330 = sphi 0, %s330
      %s332 = sphi 0, %s330
      %s333 = sphi 0, %s332
      %s347 = sphi 0, %s333
      %s351 = sphi 0, %s351
      %s353 = sphi 0, %s351
      %s354 = sphi 0, %s353
      %s368 = sphi 0, %s354
      %s374 = sphi 0, %s376
      %s377 = sphi 0, %s374
      %s378 = sphi 0, %s377
      %s394 = sphi 0, %s378
    $region4: #{tpu_custom_call.1} parent=1 // loop_header_branch
      %26 = sbr.rel (%p24) target = $region8
    $region5: #{tpu_custom_call.1} parent=1 // loop_body
      %s28 = ssub.s32 %s23, 1
      %s29 = ssub.s32 %s23, 2
      %s30 = sadd.s32 %s23, 1
      %s32 = sadd.s32 %s31, 1
      %p35 = scmp.eq.s32.totalorder %s23, 1
      %p36 = scmp.ne.s32.totalorder %s31, %s33
      %p37 = scmp.eq.s32.totalorder %s23, 0
      %p38 = por %p36, %p37
      %p39 = scmp.ne.s32.totalorder %s31, %s33
      %p40 = scmp.eq.s32.totalorder %s28, 1
      %p41 = por %p39, %p40
      %p42 = scmp.ne.s32.totalorder %s33, %s34
      %p43 = scmp.eq.s32.totalorder %s28, 0
      %p44 = por %p42, %p43
      %p45 = scmp.ne.s32.totalorder %s33, %s34
      %p46 = scmp.eq.s32.totalorder %s29, 1
      %p47 = por %p45, %p46
      %p49 = scmp.ne.s32.totalorder %s34, %s48
      %p50 = scmp.eq.s32.totalorder %s29, 0
      %p51 = por %p49, %p50
      %s52 = ssub.s32 %s23, %s30
      %p53 = scmp.eq.s32.totalorder %s52, 0
      %s55 = sadd.s32 %s54, 1
      %s56 = scalar_select %p53, %s54, %s55
      %p59 = pneg %p53
      %p60 = scmp.eq.s32.totalorder %s23, 1
      %p61 = por %p59, %p60
      %p62 = scmp.ne.s32.totalorder %s54, %s57
      %p63 = scmp.eq.s32.totalorder %s23, 0
      %p64 = por %p62, %p63
      %p65 = scmp.ne.s32.totalorder %s54, %s57
      %p66 = scmp.eq.s32.totalorder %s28, 1
      %p67 = por %p65, %p66
      %p68 = scmp.ne.s32.totalorder %s57, %s58
      %p69 = scmp.eq.s32.totalorder %s28, 0
      %p70 = por %p68, %p69
      %p71 = scmp.ne.s32.totalorder %s57, %s58
      %p72 = scmp.eq.s32.totalorder %s29, 1
      %p73 = por %p71, %p72
      %p75 = scmp.ne.s32.totalorder %s58, %s74
      %p76 = scmp.eq.s32.totalorder %s29, 0
      %p77 = por %p75, %p76
      %s79 = sadd.s32 %s78, 1
      %p82 = scmp.eq.s32.totalorder %s23, 1
      %p83 = scmp.ne.s32.totalorder %s78, %s80
      %p84 = scmp.eq.s32.totalorder %s23, 0
      %p85 = por %p83, %p84
      %p86 = scmp.ne.s32.totalorder %s78, %s80
      %p87 = scmp.eq.s32.totalorder %s28, 1
      %p88 = por %p86, %p87
      %p89 = scmp.ne.s32.totalorder %s80, %s81
      %p90 = scmp.eq.s32.totalorder %s28, 0
      %p91 = por %p89, %p90
      %p92 = scmp.ne.s32.totalorder %s80, %s81
      %p93 = scmp.eq.s32.totalorder %s29, 1
      %p94 = por %p92, %p93
      %p96 = scmp.ne.s32.totalorder %s81, %s95
      %p97 = scmp.eq.s32.totalorder %s29, 0
      %p98 = por %p96, %p97
      %s100 = sadd.s32 %s99, 1
      %p103 = scmp.eq.s32.totalorder %s23, 1
      %p104 = scmp.ne.s32.totalorder %s99, %s101
      %p105 = scmp.eq.s32.totalorder %s23, 0
      %p106 = por %p104, %p105
      %p107 = scmp.ne.s32.totalorder %s99, %s101
      %p108 = scmp.eq.s32.totalorder %s28, 1
      %p109 = por %p107, %p108
      %p110 = scmp.ne.s32.totalorder %s101, %s102
      %p111 = scmp.eq.s32.totalorder %s28, 0
      %p112 = por %p110, %p111
      %p113 = scmp.ne.s32.totalorder %s101, %s102
      %p114 = scmp.eq.s32.totalorder %s29, 1
      %p115 = por %p113, %p114
      %p117 = scmp.ne.s32.totalorder %s102, %s116
      %p118 = scmp.eq.s32.totalorder %s29, 0
      %p119 = por %p117, %p118
      %s121 = sadd.s32 %s120, 1
      %p124 = scmp.eq.s32.totalorder %s23, 1
      %p125 = scmp.ne.s32.totalorder %s120, %s122
      %p126 = scmp.eq.s32.totalorder %s23, 0
      %p127 = por %p125, %p126
      %p128 = scmp.ne.s32.totalorder %s120, %s122
      %p129 = scmp.eq.s32.totalorder %s28, 1
      %p130 = por %p128, %p129
      %p131 = scmp.ne.s32.totalorder %s122, %s123
      %p132 = scmp.eq.s32.totalorder %s28, 0
      %p133 = por %p131, %p132
      %p134 = scmp.ne.s32.totalorder %s122, %s123
      %p135 = scmp.eq.s32.totalorder %s29, 1
      %p136 = por %p134, %p135
      %p138 = scmp.ne.s32.totalorder %s123, %s137
      %p139 = scmp.eq.s32.totalorder %s29, 0
      %p140 = por %p138, %p139
      %s142 = sadd.s32 %s141, 1
      %p145 = scmp.eq.s32.totalorder %s23, 1
      %p146 = scmp.ne.s32.totalorder %s141, %s143
      %p147 = scmp.eq.s32.totalorder %s23, 0
      %p148 = por %p146, %p147
      %p149 = scmp.ne.s32.totalorder %s141, %s143
      %p150 = scmp.eq.s32.totalorder %s28, 1
      %p151 = por %p149, %p150
      %p152 = scmp.ne.s32.totalorder %s143, %s144
      %p153 = scmp.eq.s32.totalorder %s28, 0
      %p154 = por %p152, %p153
      %p155 = scmp.ne.s32.totalorder %s143, %s144
      %p156 = scmp.eq.s32.totalorder %s29, 1
      %p157 = por %p155, %p156
      %p159 = scmp.ne.s32.totalorder %s144, %s158
      %p160 = scmp.eq.s32.totalorder %s29, 0
      %p161 = por %p159, %p160
      %s163 = sadd.s32 %s162, 1
      %p166 = scmp.eq.s32.totalorder %s23, 1
      %p167 = scmp.ne.s32.totalorder %s162, %s164
      %p168 = scmp.eq.s32.totalorder %s23, 0
      %p169 = por %p167, %p168
      %p170 = scmp.ne.s32.totalorder %s162, %s164
      %p171 = scmp.eq.s32.totalorder %s28, 1
      %p172 = por %p170, %p171
      %p173 = scmp.ne.s32.totalorder %s164, %s165
      %p174 = scmp.eq.s32.totalorder %s28, 0
      %p175 = por %p173, %p174
      %p176 = scmp.ne.s32.totalorder %s164, %s165
      %p177 = scmp.eq.s32.totalorder %s29, 1
      %p178 = por %p176, %p177
      %p180 = scmp.ne.s32.totalorder %s165, %s179
      %p181 = scmp.eq.s32.totalorder %s29, 0
      %p182 = por %p180, %p181
      %s184 = sadd.s32 %s183, 1
      %p187 = scmp.eq.s32.totalorder %s23, 1
      %p188 = scmp.ne.s32.totalorder %s183, %s185
      %p189 = scmp.eq.s32.totalorder %s23, 0
      %p190 = por %p188, %p189
      %p191 = scmp.ne.s32.totalorder %s183, %s185
      %p192 = scmp.eq.s32.totalorder %s28, 1
      %p193 = por %p191, %p192
      %p194 = scmp.ne.s32.totalorder %s185, %s186
      %p195 = scmp.eq.s32.totalorder %s28, 0
      %p196 = por %p194, %p195
      %p197 = scmp.ne.s32.totalorder %s185, %s186
      %p198 = scmp.eq.s32.totalorder %s29, 1
      %p199 = por %p197, %p198
      %p201 = scmp.ne.s32.totalorder %s186, %s200
      %p202 = scmp.eq.s32.totalorder %s29, 0
      %p203 = por %p201, %p202
      %s205 = sadd.s32 %s204, 1
      %p208 = scmp.eq.s32.totalorder %s23, 1
      %p209 = scmp.ne.s32.totalorder %s204, %s206
      %p210 = scmp.eq.s32.totalorder %s23, 0
      %p211 = por %p209, %p210
      %p212 = scmp.ne.s32.totalorder %s204, %s206
      %p213 = scmp.eq.s32.totalorder %s28, 1
      %p214 = por %p212, %p213
      %p215 = scmp.ne.s32.totalorder %s206, %s207
      %p216 = scmp.eq.s32.totalorder %s28, 0
      %p217 = por %p215, %p216
      %p218 = scmp.ne.s32.totalorder %s206, %s207
      %p219 = scmp.eq.s32.totalorder %s29, 1
      %p220 = por %p218, %p219
      %p222 = scmp.ne.s32.totalorder %s207, %s221
      %p223 = scmp.eq.s32.totalorder %s29, 0
      %p224 = por %p222, %p223
      %s226 = sadd.s32 %s225, 1
      %p229 = scmp.eq.s32.totalorder %s23, 1
      %p230 = scmp.ne.s32.totalorder %s225, %s227
      %p231 = scmp.eq.s32.totalorder %s23, 0
      %p232 = por %p230, %p231
      %p233 = scmp.ne.s32.totalorder %s225, %s227
      %p234 = scmp.eq.s32.totalorder %s28, 1
      %p235 = por %p233, %p234
      %p236 = scmp.ne.s32.totalorder %s227, %s228
      %p237 = scmp.eq.s32.totalorder %s28, 0
      %p238 = por %p236, %p237
      %p239 = scmp.ne.s32.totalorder %s227, %s228
      %p240 = scmp.eq.s32.totalorder %s29, 1
      %p241 = por %p239, %p240
      %p243 = scmp.ne.s32.totalorder %s228, %s242
      %p244 = scmp.eq.s32.totalorder %s29, 0
      %p245 = por %p243, %p244
      %s247 = sadd.s32 %s246, 1
      %p250 = scmp.eq.s32.totalorder %s23, 1
      %p251 = scmp.ne.s32.totalorder %s246, %s248
      %p252 = scmp.eq.s32.totalorder %s23, 0
      %p253 = por %p251, %p252
      %p254 = scmp.ne.s32.totalorder %s246, %s248
      %p255 = scmp.eq.s32.totalorder %s28, 1
      %p256 = por %p254, %p255
      %p257 = scmp.ne.s32.totalorder %s248, %s249
      %p258 = scmp.eq.s32.totalorder %s28, 0
      %p259 = por %p257, %p258
      %p260 = scmp.ne.s32.totalorder %s248, %s249
      %p261 = scmp.eq.s32.totalorder %s29, 1
      %p262 = por %p260, %p261
      %p264 = scmp.ne.s32.totalorder %s249, %s263
      %p265 = scmp.eq.s32.totalorder %s29, 0
      %p266 = por %p264, %p265
      %s268 = sadd.s32 %s267, 1
      %p271 = scmp.eq.s32.totalorder %s23, 1
      %p272 = scmp.ne.s32.totalorder %s267, %s269
      %p273 = scmp.eq.s32.totalorder %s23, 0
      %p274 = por %p272, %p273
      %p275 = scmp.ne.s32.totalorder %s267, %s269
      %p276 = scmp.eq.s32.totalorder %s28, 1
      %p277 = por %p275, %p276
      %p278 = scmp.ne.s32.totalorder %s269, %s270
      %p279 = scmp.eq.s32.totalorder %s28, 0
      %p280 = por %p278, %p279
      %p281 = scmp.ne.s32.totalorder %s269, %s270
      %p282 = scmp.eq.s32.totalorder %s29, 1
      %p283 = por %p281, %p282
      %p285 = scmp.ne.s32.totalorder %s270, %s284
      %p286 = scmp.eq.s32.totalorder %s29, 0
      %p287 = por %p285, %p286
      %s289 = sadd.s32 %s288, 1
      %p292 = scmp.eq.s32.totalorder %s23, 1
      %p293 = scmp.ne.s32.totalorder %s288, %s290
      %p294 = scmp.eq.s32.totalorder %s23, 0
      %p295 = por %p293, %p294
      %p296 = scmp.ne.s32.totalorder %s288, %s290
      %p297 = scmp.eq.s32.totalorder %s28, 1
      %p298 = por %p296, %p297
      %p299 = scmp.ne.s32.totalorder %s290, %s291
      %p300 = scmp.eq.s32.totalorder %s28, 0
      %p301 = por %p299, %p300
      %p302 = scmp.ne.s32.totalorder %s290, %s291
      %p303 = scmp.eq.s32.totalorder %s29, 1
      %p304 = por %p302, %p303
      %p306 = scmp.ne.s32.totalorder %s291, %s305
      %p307 = scmp.eq.s32.totalorder %s29, 0
      %p308 = por %p306, %p307
      %s310 = sadd.s32 %s309, 1
      %p313 = scmp.eq.s32.totalorder %s23, 1
      %p314 = scmp.ne.s32.totalorder %s309, %s311
      %p315 = scmp.eq.s32.totalorder %s23, 0
      %p316 = por %p314, %p315
      %p317 = scmp.ne.s32.totalorder %s309, %s311
      %p318 = scmp.eq.s32.totalorder %s28, 1
      %p319 = por %p317, %p318
      %p320 = scmp.ne.s32.totalorder %s311, %s312
      %p321 = scmp.eq.s32.totalorder %s28, 0
      %p322 = por %p320, %p321
      %p323 = scmp.ne.s32.totalorder %s311, %s312
      %p324 = scmp.eq.s32.totalorder %s29, 1
      %p325 = por %p323, %p324
      %p327 = scmp.ne.s32.totalorder %s312, %s326
      %p328 = scmp.eq.s32.totalorder %s29, 0
      %p329 = por %p327, %p328
      %s331 = sadd.s32 %s330, 1
      %p334 = scmp.eq.s32.totalorder %s23, 1
      %p335 = scmp.ne.s32.totalorder %s330, %s332
      %p336 = scmp.eq.s32.totalorder %s23, 0
      %p337 = por %p335, %p336
      %p338 = scmp.ne.s32.totalorder %s330, %s332
      %p339 = scmp.eq.s32.totalorder %s28, 1
      %p340 = por %p338, %p339
      %p341 = scmp.ne.s32.totalorder %s332, %s333
      %p342 = scmp.eq.s32.totalorder %s28, 0
      %p343 = por %p341, %p342
      %p344 = scmp.ne.s32.totalorder %s332, %s333
      %p345 = scmp.eq.s32.totalorder %s29, 1
      %p346 = por %p344, %p345
      %p348 = scmp.ne.s32.totalorder %s333, %s347
      %p349 = scmp.eq.s32.totalorder %s29, 0
      %p350 = por %p348, %p349
      %s352 = sadd.s32 %s351, 1
      %p355 = scmp.eq.s32.totalorder %s23, 1
      %p356 = scmp.ne.s32.totalorder %s351, %s353
      %p357 = scmp.eq.s32.totalorder %s23, 0
      %p358 = por %p356, %p357
      %p359 = scmp.ne.s32.totalorder %s351, %s353
      %p360 = scmp.eq.s32.totalorder %s28, 1
      %p361 = por %p359, %p360
      %p362 = scmp.ne.s32.totalorder %s353, %s354
      %p363 = scmp.eq.s32.totalorder %s28, 0
      %p364 = por %p362, %p363
      %p365 = scmp.ne.s32.totalorder %s353, %s354
      %p366 = scmp.eq.s32.totalorder %s29, 1
      %p367 = por %p365, %p366
      %p369 = scmp.ne.s32.totalorder %s354, %s368
      %p370 = scmp.eq.s32.totalorder %s29, 0
      %p371 = por %p369, %p370
      %s372 = ssub.s32 %s23, %s30
      %p373 = scmp.eq.s32.totalorder %s372, 0
      %s375 = sadd.s32 %s374, 1
      %s376 = scalar_select %p373, %s374, %s375
      %p379 = pneg %p373
      %p380 = scmp.eq.s32.totalorder %s23, 1
      %p381 = por %p379, %p380
      %p382 = scmp.ne.s32.totalorder %s374, %s377
      %p383 = scmp.eq.s32.totalorder %s23, 0
      %p384 = por %p382, %p383
      %p385 = scmp.ne.s32.totalorder %s374, %s377
      %p386 = scmp.eq.s32.totalorder %s28, 1
      %p387 = por %p385, %p386
      %p388 = scmp.ne.s32.totalorder %s377, %s378
      %p389 = scmp.eq.s32.totalorder %s28, 0
      %p390 = por %p388, %p389
      %p391 = scmp.ne.s32.totalorder %s377, %s378
      %p392 = scmp.eq.s32.totalorder %s29, 1
      %p393 = por %p391, %p392
      %p395 = scmp.ne.s32.totalorder %s378, %s394
      %p396 = scmp.eq.s32.totalorder %s29, 0
      %p397 = por %p395, %p396
      %p398 = scmp.le.s32.totalorder 1, %s23
      %p399 = scmp.lt.s32.totalorder %s23, 3
      %p400 = pnand %p398, %p399
      %p401 = pneg %p400
      // Predicated region
      $region9: #{tpu_custom_call.1} parent=5 // pred_check
        _
      $region10: #{tpu_custom_call.1} parent=5 // pred_check_branch
        %403 = sbr.rel (%p400) target = $region12
      $region11: #{tpu_custom_call.1} parent=5 // pred_region
        %s404 = ssub.s32 %s23, 1
        // Predicated region
        $region13: #{tpu_custom_call.1} parent=11 // pred_check
          %p405 = pneg %p44
        $region14: #{tpu_custom_call.1} parent=11 // pred_check_branch
          %407 = sbr.rel (%p405) target = $region16
        $region15: #{tpu_custom_call.1} parent=11 // pred_region
          _
        $region16: #{tpu_custom_call.1} parent=11 // pred_fallthru
          _
        // Predicated region
        $region17: #{tpu_custom_call.1} parent=11 // pred_check
          %p408 = pneg %p91
        $region18: #{tpu_custom_call.1} parent=11 // pred_check_branch
          %410 = sbr.rel (%p408) target = $region20
        $region19: #{tpu_custom_call.1} parent=11 // pred_region
          _
        $region20: #{tpu_custom_call.1} parent=11 // pred_fallthru
          _
        // Predicated region
        $region21: #{tpu_custom_call.1} parent=11 // pred_check
          %p411 = pneg %p112
        $region22: #{tpu_custom_call.1} parent=11 // pred_check_branch
          %413 = sbr.rel (%p411) target = $region24
        $region23: #{tpu_custom_call.1} parent=11 // pred_region
          _
        $region24: #{tpu_custom_call.1} parent=11 // pred_fallthru
          _
        // Predicated region
        $region25: #{tpu_custom_call.1} parent=11 // pred_check
          %p414 = pneg %p133
        $region26: #{tpu_custom_call.1} parent=11 // pred_check_branch
          %416 = sbr.rel (%p414) target = $region28
        $region27: #{tpu_custom_call.1} parent=11 // pred_region
          _
        $region28: #{tpu_custom_call.1} parent=11 // pred_fallthru
          _
        // Predicated region
        $region29: #{tpu_custom_call.1} parent=11 // pred_check
          %p417 = pneg %p154
        $region30: #{tpu_custom_call.1} parent=11 // pred_check_branch
          %419 = sbr.rel (%p417) target = $region32
        $region31: #{tpu_custom_call.1} parent=11 // pred_region
          _
        $region32: #{tpu_custom_call.1} parent=11 // pred_fallthru
          _
        // Predicated region
        $region33: #{tpu_custom_call.1} parent=11 // pred_check
          %p420 = pneg %p175
        $region34: #{tpu_custom_call.1} parent=11 // pred_check_branch
          %422 = sbr.rel (%p420) target = $region36
        $region35: #{tpu_custom_call.1} parent=11 // pred_region
          _
        $region36: #{tpu_custom_call.1} parent=11 // pred_fallthru
          _
        // Predicated region
        $region37: #{tpu_custom_call.1} parent=11 // pred_check
          %p423 = pneg %p196
        $region38: #{tpu_custom_call.1} parent=11 // pred_check_branch
          %425 = sbr.rel (%p423) target = $region40
        $region39: #{tpu_custom_call.1} parent=11 // pred_region
          _
        $region40: #{tpu_custom_call.1} parent=11 // pred_fallthru
          _
        // Predicated region
        $region41: #{tpu_custom_call.1} parent=11 // pred_check
          %p426 = pneg %p217
        $region42: #{tpu_custom_call.1} parent=11 // pred_check_branch
          %428 = sbr.rel (%p426) target = $region44
        $region43: #{tpu_custom_call.1} parent=11 // pred_region
          _
        $region44: #{tpu_custom_call.1} parent=11 // pred_fallthru
          _
        // Predicated region
        $region45: #{tpu_custom_call.1} parent=11 // pred_check
          %p429 = pneg %p238
        $region46: #{tpu_custom_call.1} parent=11 // pred_check_branch
          %431 = sbr.rel (%p429) target = $region48
        $region47: #{tpu_custom_call.1} parent=11 // pred_region
          _
        $region48: #{tpu_custom_call.1} parent=11 // pred_fallthru
          _
        // Predicated region
        $region49: #{tpu_custom_call.1} parent=11 // pred_check
          %p432 = pneg %p259
        $region50: #{tpu_custom_call.1} parent=11 // pred_check_branch
          %434 = sbr.rel (%p432) target = $region52
        $region51: #{tpu_custom_call.1} parent=11 // pred_region
          _
        $region52: #{tpu_custom_call.1} parent=11 // pred_fallthru
          _
        // Predicated region
        $region53: #{tpu_custom_call.1} parent=11 // pred_check
          %p435 = pneg %p280
        $region54: #{tpu_custom_call.1} parent=11 // pred_check_branch
          %437 = sbr.rel (%p435) target = $region56
        $region55: #{tpu_custom_call.1} parent=11 // pred_region
          _
        $region56: #{tpu_custom_call.1} parent=11 // pred_fallthru
          _
        // Predicated region
        $region57: #{tpu_custom_call.1} parent=11 // pred_check
          %p438 = pneg %p301
        $region58: #{tpu_custom_call.1} parent=11 // pred_check_branch
          %440 = sbr.rel (%p438) target = $region60
        $region59: #{tpu_custom_call.1} parent=11 // pred_region
          _
        $region60: #{tpu_custom_call.1} parent=11 // pred_fallthru
          _
        // Predicated region
        $region61: #{tpu_custom_call.1} parent=11 // pred_check
          %p441 = pneg %p322
        $region62: #{tpu_custom_call.1} parent=11 // pred_check_branch
          %443 = sbr.rel (%p441) target = $region64
        $region63: #{tpu_custom_call.1} parent=11 // pred_region
          _
        $region64: #{tpu_custom_call.1} parent=11 // pred_fallthru
          _
        // Predicated region
        $region65: #{tpu_custom_call.1} parent=11 // pred_check
          %p444 = pneg %p343
        $region66: #{tpu_custom_call.1} parent=11 // pred_check_branch
          %446 = sbr.rel (%p444) target = $region68
        $region67: #{tpu_custom_call.1} parent=11 // pred_region
          _
        $region68: #{tpu_custom_call.1} parent=11 // pred_fallthru
          _
        // Predicated region
        $region69: #{tpu_custom_call.1} parent=11 // pred_check
          %p447 = pneg %p364
        $region70: #{tpu_custom_call.1} parent=11 // pred_check_branch
          %449 = sbr.rel (%p447) target = $region72
        $region71: #{tpu_custom_call.1} parent=11 // pred_region
          _
        $region72: #{tpu_custom_call.1} parent=11 // pred_fallthru
          _
      $region12: #{tpu_custom_call.1} parent=5 // pred_fallthru
        _
      %p450 = scmp.lt.s32.totalorder %s23, 2
      // Predicated region
      $region73: #{tpu_custom_call.1} parent=5 // pred_check
        %p451 = pneg %p450
      $region74: #{tpu_custom_call.1} parent=5 // pred_check_branch
        %453 = sbr.rel (%p451) target = $region76
      $region75: #{tpu_custom_call.1} parent=5 // pred_region
        // Predicated region
        $region77: #{tpu_custom_call.1} parent=75 // pred_check
          %p454 = pneg %p64
        $region78: #{tpu_custom_call.1} parent=75 // pred_check_branch
          %456 = sbr.rel (%p454) target = $region80
        $region79: #{tpu_custom_call.1} parent=75 // pred_region
          %p457 = scmp.lt.s32.totalorder %s23, 1
          %s458 = scalar_select %p457, %s23, 1
          %s459 = scalar_lea.vmem %s1, %s458
        $region80: #{tpu_custom_call.1} parent=75 // pred_fallthru
          _
      $region76: #{tpu_custom_call.1} parent=5 // pred_fallthru
        _
      %p460 = scmp.le.s32.totalorder 1, %s23
      %p461 = scmp.lt.s32.totalorder %s23, 3
      %p462 = pnand %p460, %p461
      %p463 = pneg %p462
      // Predicated region
      $region81: #{tpu_custom_call.1} parent=5 // pred_check
        _
      $region82: #{tpu_custom_call.1} parent=5 // pred_check_branch
        %465 = sbr.rel (%p462) target = $region84
      $region83: #{tpu_custom_call.1} parent=5 // pred_region
        %s466 = ssub.s32 %s23, 1
        %p467 = pneg %p44
        %p468 = pneg %p41
        %p469 = scmp.lt.s32.totalorder %s28, 1
        %s470 = scalar_select %p469, %s28, 1
        %s471 = scalar_lea.vmem %s1, %s470
        %p472 = pneg %p70
        %p473 = pneg %p67
        %p474 = pneg %p91
        %p475 = pneg %p88
        %p476 = pneg %p112
        %p477 = pneg %p109
        %p478 = pneg %p133
        %p479 = pneg %p130
        %p480 = pneg %p154
        %p481 = pneg %p151
        %p482 = pneg %p175
        %p483 = pneg %p172
        %p484 = pneg %p196
        %p485 = pneg %p193
        %p486 = pneg %p217
        %p487 = pneg %p214
        %p488 = pneg %p238
        %p489 = pneg %p235
        %p490 = pneg %p259
        %p491 = pneg %p256
        %p492 = pneg %p280
        %p493 = pneg %p277
        %p494 = pneg %p301
        %p495 = pneg %p298
        %p496 = pneg %p322
        %p497 = pneg %p319
        %p498 = pneg %p343
        %p499 = pneg %p340
        %p500 = pneg %p364
        %p501 = pneg %p361
        %p502 = pneg %p390
        %p503 = pneg %p387
        %s504 = sand.u32 %s377, 1
        %s505 = sand.u32 %s377, 1
        %s506 = smul.addr %s505, 16
        %s507 = scalar_lea.vmem [#allocation4], %s506
        %p508 = scmp.lt.s32.totalorder %s28, 1
        %s509 = scalar_select %p508, %s28, 1
        %s510 = scalar_lea.vmem %s1, %s509
        %p512 = scmp.eq.s32.totalorder %s28, 0
        // Predicated region
        $region85: #{tpu_custom_call.1} parent=83 // pred_check
          %p513 = pneg %p512
        $region86: #{tpu_custom_call.1} parent=83 // pred_check_branch
          %515 = sbr.rel (%p513) target = $region88
        $region87: #{tpu_custom_call.1} parent=83 // pred_region
          %v516 = vld [vmem:[%s4] sm:$0x3]
          %vm517 = vcmask 254976
          %518 = vst.msk [vmem:[#allocation2] sm:$0x3] %vm517, %v516
        $region88: #{tpu_custom_call.1} parent=83 // pred_fallthru
          _
        %v519 = vld [vmem:[%s0] sm:$0x3]
        %vm520 = vcmp.ne.f32.partialorder %v519, 0.0
        %v521 = vlaneseq
        %v522 = vand.u32 %v521, 127
        %v523 = vadd.s32 %v522, 128
        %v524 = vld [vmem:[%s10] sm:$0x1]
        %v525 = vld [vmem:[%s11] sm:$0x1]
        %v526 = vld [vmem:[%s12] sm:$0x1]
        %v527 = vld [vmem:[%s13] sm:$0x1]
        %v528 = vld [vmem:[%s14] sm:$0x1]
        %s529 = sld [smem:[#allocation3]]
        %v530 = vld [vmem:[#allocation2] sm:$0x3]
        %v531 = vld [vmem:[%s510] sm:$0x1]
        %v532 = vunpack.c.l.bf16 %v531
        loop: start=0, step=1, limit=3
        $region89: #{tpu_custom_call.1} parent=83 // loop_pre_header
          _
        $region90: #{tpu_custom_call.1} parent=83 // loop_header
          %s534 = sphi 0, %s538
          %p535 = scmp.ge.s32.totalorder %s534, 3
          %v539 = vphi %v530, %v1267
          %v540 = vphi %v532, %v1260
        $region91: #{tpu_custom_call.1} parent=83 // loop_header_branch
          %537 = sbr.rel (%p535) target = $region95
        $region92: #{tpu_custom_call.1} parent=83 // loop_body
          %v541 = vpack.c.bf16 %v540, %v540
          %v542 = vld [vmem:[%s8] sm:$0xf]
          %v543 = vld [vmem:[%s8 + $0x4] sm:$0xf]
          %v544 = vld [vmem:[%s8 + $0x8] sm:$0xf]
          %v545 = vld [vmem:[%s8 + $0xc] sm:$0xf]
          %v547 = vlaneseq
          %v548 = vshrl.u32 %v547, 7
          %v549 = vsub.s32 0, %v548
          %v550 = vrot.slane %v524, %v549
          %v556 = vunpack.c.l.b16 %v542
          %v557 = vunpack.c.l.b16 %v543
          %v558 = vunpack.c.l.b16 %v544
          %v559 = vunpack.c.l.b16 %v545
          %v560 = vpack.c.b16 %v557, %v556
          %v561 = vpack.c.b16 %v559, %v558
          %vm564 = vcmask 261120
          %v566 = vsel %vm564, %v541, 0
          %568 = vmatprep.subr.bf16.mxu0 0
          %569 = vmatpush1.bf16.msra.mxu0 0
          %570 = vmatprep.subr.bf16.mxu0 0
          %571 = vmatpush1.bf16.msra.mxu0 0
          %572 = vmatprep.subr.bf16.mxu0 0
          %573 = vmatpush1.bf16.msra.mxu0 0
          %574 = vmatprep.subr.bf16.mxu0 0
          %575 = vmatpush1.bf16.msra.mxu0 0
          %576 = vmatprep.subr.bf16.mxu0 0
          %577 = vmatpush1.bf16.msra.mxu0 0
          %578 = vmatprep.subr.bf16.mxu0 0
          %579 = vmatpush1.bf16.msra.mxu0 0
          %580 = vmatprep.subr.bf16.mxu0 0
          %581 = vmatpush1.bf16.msra.mxu0 %v561
          %582 = vmatprep.subr.bf16.mxu0 0
          %583 = vmatpush1.bf16.msra.mxu0 %v560
          %584 = vmatprep.subr.bf16.mxu0 0
          %585 = vmatpush2.bf16.msra.mxu0 0
          %586 = vmatprep.subr.bf16.mxu0 0
          %587 = vmatpush2.bf16.msra.mxu0 0
          %588 = vmatprep.subr.bf16.mxu0 0
          %589 = vmatpush2.bf16.msra.mxu0 0
          %590 = vmatprep.subr.bf16.mxu0 0
          %591 = vmatpush2.bf16.msra.mxu0 0
          %592 = vmatprep.subr.bf16.mxu0 0
          %593 = vmatpush2.bf16.msra.mxu0 0
          %594 = vmatprep.subr.bf16.mxu0 0
          %595 = vmatpush2.bf16.msra.mxu0 0
          %596 = vmatprep.subr.bf16.mxu0 0
          %597 = vmatpush2.bf16.msra.mxu0 0
          %598 = vmatprep.subr.bf16.mxu0 0
          %599 = vmatpush2.bf16.msra.mxu0 0
          %600 = vmatprep.mubr.bf16.mxu0 0
          %601 = vmatmul.mubr.bf16.gmra.mxu0 %v566
          %v602 = vpop.f32.mrf.mxu0
          %v603 = vadd.f32 %v550, %v602
          %v604 = vpop.f32.mrf.mxu0
          %v605 = vpop.f32.mrf.mxu0
          %v606 = vpop.f32.mrf.mxu0
          %607 = vdwg.mxu0
          %v608 = vpack.c.bf16 %v539, %v539
          %v609 = vld [vmem:[%s9] sm:$0xf]
          %v610 = vld [vmem:[%s9 + $0x4] sm:$0xf]
          %v611 = vld [vmem:[%s9 + $0x8] sm:$0xf]
          %v612 = vld [vmem:[%s9 + $0xc] sm:$0xf]
          %v614 = vlaneseq
          %v615 = vshrl.u32 %v614, 7
          %v616 = vsub.s32 0, %v615
          %v617 = vrot.slane %v525, %v616
          %v623 = vunpack.c.l.b16 %v609
          %v624 = vunpack.c.l.b16 %v610
          %v625 = vunpack.c.l.b16 %v611
          %v626 = vunpack.c.l.b16 %v612
          %v627 = vpack.c.b16 %v624, %v623
          %v628 = vpack.c.b16 %v626, %v625
          %v632 = vsel %vm564, %v608, 0
          %634 = vmatprep.subr.bf16.mxu0 0
          %635 = vmatpush1.bf16.msra.mxu0 0
          %636 = vmatprep.subr.bf16.mxu0 0
          %637 = vmatpush1.bf16.msra.mxu0 0
          %638 = vmatprep.subr.bf16.mxu0 0
          %639 = vmatpush1.bf16.msra.mxu0 0
          %640 = vmatprep.subr.bf16.mxu0 0
          %641 = vmatpush1.bf16.msra.mxu0 0
          %642 = vmatprep.subr.bf16.mxu0 0
          %643 = vmatpush1.bf16.msra.mxu0 0
          %644 = vmatprep.subr.bf16.mxu0 0
          %645 = vmatpush1.bf16.msra.mxu0 0
          %646 = vmatprep.subr.bf16.mxu0 0
          %647 = vmatpush1.bf16.msra.mxu0 %v628
          %648 = vmatprep.subr.bf16.mxu0 0
          %649 = vmatpush1.bf16.msra.mxu0 %v627
          %650 = vmatprep.subr.bf16.mxu0 0
          %651 = vmatpush2.bf16.msra.mxu0 0
          %652 = vmatprep.subr.bf16.mxu0 0
          %653 = vmatpush2.bf16.msra.mxu0 0
          %654 = vmatprep.subr.bf16.mxu0 0
          %655 = vmatpush2.bf16.msra.mxu0 0
          %656 = vmatprep.subr.bf16.mxu0 0
          %657 = vmatpush2.bf16.msra.mxu0 0
          %658 = vmatprep.subr.bf16.mxu0 0
          %659 = vmatpush2.bf16.msra.mxu0 0
          %660 = vmatprep.subr.bf16.mxu0 0
          %661 = vmatpush2.bf16.msra.mxu0 0
          %662 = vmatprep.subr.bf16.mxu0 0
          %663 = vmatpush2.bf16.msra.mxu0 0
          %664 = vmatprep.subr.bf16.mxu0 0
          %665 = vmatpush2.bf16.msra.mxu0 0
          %666 = vmatprep.mubr.bf16.mxu0 0
          %667 = vmatmul.mubr.bf16.gmra.mxu0 %v632
          %v668 = vpop.f32.mrf.mxu0
          %v669 = vadd.f32 %v617, %v668
          %v670 = vpop.f32.mrf.mxu0
          %v671 = vpop.f32.mrf.mxu0
          %v672 = vpop.f32.mrf.mxu0
          %673 = vdwg.mxu0
          %v674 = vadd.f32 %v603, %v669
          %v675 = vxor.u32 %v674, 2147483648
          %v676 = vmul.f32 %v675, 1.442695
          %v677 = vpow.pop %v676
          %v678 = vadd.f32 %v677, 1.0
          %v679 = vrcp.pop %v678
          %v680 = vmul.f32 1.0, %v679
          %682 = vrot.lane.b32.xlu0 %v669, 64
          %v683 = vpop.permute.xlu0 %682
          %v685 = vmul.f32 %v680, %v683
          %687 = vrot.lane.b32.xlu0 %v685, 64
          %v688 = vpop.permute.xlu0 %687
          %v690 = vadd.f32 %v603, %v688
          %v691 = vtanh.pop %v690
          %v692 = vsub.f32 1.0, %v680
          %694 = vrot.lane.b32.xlu0 %v691, 96
          %v695 = vpop.permute.xlu0 %694
          %v697 = vmul.f32 %v692, %v695
          %699 = vrot.lane.b32.xlu0 %v539, 32
          %v700 = vpop.permute.xlu0 %699
          %v702 = vmul.f32 %v680, %v700
          %v703 = vadd.f32 %v697, %v702
          %v704 = vpack.c.bf16 %v703, %v703
          %v705 = vld [vmem:[%s2] sm:$0xf]
          %v706 = vld [vmem:[%s2 + $0x4] sm:$0xf]
          %v707 = vld [vmem:[%s2 + $0x8] sm:$0xf]
          %v708 = vld [vmem:[%s2 + $0xc] sm:$0xf]
          %710 = vrot.lane.b32.xlu0 %v704, 96
          %v711 = vpop.permute.xlu0 %710
          %v716 = vunpack.c.l.b16 %v705
          %v717 = vunpack.c.l.b16 %v706
          %v718 = vunpack.c.l.b16 %v707
          %v719 = vunpack.c.l.b16 %v708
          %v720 = vpack.c.b16 %v717, %v716
          %v721 = vpack.c.b16 %v719, %v718
          %v725 = vsel %vm564, %v711, 0
          %727 = vmatprep.subr.bf16.mxu0 0
          %728 = vmatpush1.bf16.msra.mxu0 0
          %729 = vmatprep.subr.bf16.mxu0 0
          %730 = vmatpush1.bf16.msra.mxu0 0
          %731 = vmatprep.subr.bf16.mxu0 0
          %732 = vmatpush1.bf16.msra.mxu0 0
          %733 = vmatprep.subr.bf16.mxu0 0
          %734 = vmatpush1.bf16.msra.mxu0 0
          %735 = vmatprep.subr.bf16.mxu0 0
          %736 = vmatpush1.bf16.msra.mxu0 0
          %737 = vmatprep.subr.bf16.mxu0 0
          %738 = vmatpush1.bf16.msra.mxu0 0
          %739 = vmatprep.subr.bf16.mxu0 0
          %740 = vmatpush1.bf16.msra.mxu0 %v721
          %741 = vmatprep.subr.bf16.mxu0 0
          %742 = vmatpush1.bf16.msra.mxu0 %v720
          %743 = vmatprep.subr.bf16.mxu0 0
          %744 = vmatpush2.bf16.msra.mxu0 0
          %745 = vmatprep.subr.bf16.mxu0 0
          %746 = vmatpush2.bf16.msra.mxu0 0
          %747 = vmatprep.subr.bf16.mxu0 0
          %748 = vmatpush2.bf16.msra.mxu0 0
          %749 = vmatprep.subr.bf16.mxu0 0
          %750 = vmatpush2.bf16.msra.mxu0 0
          %751 = vmatprep.subr.bf16.mxu0 0
          %752 = vmatpush2.bf16.msra.mxu0 0
          %753 = vmatprep.subr.bf16.mxu0 0
          %754 = vmatpush2.bf16.msra.mxu0 0
          %755 = vmatprep.subr.bf16.mxu0 0
          %756 = vmatpush2.bf16.msra.mxu0 0
          %757 = vmatprep.subr.bf16.mxu0 0
          %758 = vmatpush2.bf16.msra.mxu0 0
          %759 = vmatprep.mubr.bf16.mxu0 0
          %760 = vmatmul.mubr.bf16.gmra.mxu0 %v725
          %v761 = vpop.f32.mrf.mxu0
          %v762 = vadd.f32 0.0, %v761
          %v763 = vpop.f32.mrf.mxu0
          %v764 = vpop.f32.mrf.mxu0
          %v765 = vpop.f32.mrf.mxu0
          %766 = vdwg.mxu0
          %v767 = vsel %vm520, %v762, -1e+09
          %vm768 = vcmask 123904
          %v769 = vsel %vm768, %v767, -inf
          %770 = vmax.xlane.f32.xlu0 %v769
          %v771 = vpop.xlane.xlu0 %770
          %v772 = vsub.f32 %v767, %v771
          %v773 = vmul.f32 %v772, 1.442695
          %v774 = vpow.pop %v773
          %v775 = vsel %vm768, %v774, 0.0
          %776 = vadd.xlane.f32.xlu0 %v775
          %v777 = vpop.xlane.xlu0 %776
          %v778 = vrcp.pop %v777
          %v779 = vmul.f32 %v774, %v778
          %v780 = vpack.c.bf16 %v779, %v779
          %v781 = vld [vmem:[%s5] sm:$0xff]
          %v782 = vld [vmem:[%s5 + $0x8] sm:$0xff]
          %v783 = vld [vmem:[%s5 + $0x10] sm:$0xff]
          %v784 = vld [vmem:[%s5 + $0x18] sm:$0xff]
          %v789 = vunpack.c.l.b16 %v781
          %v790 = vunpack.c.h.b16 %v781
          %v791 = vunpack.c.l.b16 %v782
          %v792 = vunpack.c.h.b16 %v782
          %v793 = vunpack.c.l.b16 %v783
          %v794 = vunpack.c.h.b16 %v783
          %v795 = vunpack.c.l.b16 %v784
          %v796 = vunpack.c.h.b16 %v784
          %v797 = vpack.c.b16 %v791, %v789
          %v798 = vpack.c.b16 %v792, %v790
          %v799 = vpack.c.b16 %v795, %v793
          %v800 = vpack.c.b16 %v796, %v794
          %805 = vmatprep.subr.bf16.mxu0 0
          %806 = vmatpush1.bf16.msra.mxu0 0
          %807 = vmatprep.subr.bf16.mxu0 0
          %808 = vmatpush1.bf16.msra.mxu0 0
          %809 = vmatprep.subr.bf16.mxu0 0
          %810 = vmatpush1.bf16.msra.mxu0 0
          %811 = vmatprep.subr.bf16.mxu0 0
          %812 = vmatpush1.bf16.msra.mxu0 0
          %813 = vmatprep.subr.bf16.mxu0 0
          %814 = vmatpush1.bf16.msra.mxu0 0
          %815 = vmatprep.subr.bf16.mxu0 0
          %816 = vmatpush1.bf16.msra.mxu0 0
          %817 = vmatprep.subr.bf16.mxu0 %v800
          %818 = vmatpush1.bf16.msra.mxu0 %v799
          %819 = vmatprep.subr.bf16.mxu0 %v798
          %820 = vmatpush1.bf16.msra.mxu0 %v797
          %821 = vmatprep.subr.bf16.mxu0 0
          %822 = vmatpush2.bf16.msra.mxu0 0
          %823 = vmatprep.subr.bf16.mxu0 0
          %824 = vmatpush2.bf16.msra.mxu0 0
          %825 = vmatprep.subr.bf16.mxu0 0
          %826 = vmatpush2.bf16.msra.mxu0 0
          %827 = vmatprep.subr.bf16.mxu0 0
          %828 = vmatpush2.bf16.msra.mxu0 0
          %829 = vmatprep.subr.bf16.mxu0 0
          %830 = vmatpush2.bf16.msra.mxu0 0
          %831 = vmatprep.subr.bf16.mxu0 0
          %832 = vmatpush2.bf16.msra.mxu0 0
          %833 = vmatprep.subr.bf16.mxu0 0
          %834 = vmatpush2.bf16.msra.mxu0 0
          %835 = vmatprep.subr.bf16.mxu0 0
          %836 = vmatpush2.bf16.msra.mxu0 0
          %837 = vmatprep.mubr.bf16.mxu0 0
          %838 = vmatmul.mubr.bf16.gmra.mxu0 %v725
          %v839 = vpop.f32.mrf.mxu0
          %v840 = vadd.f32 0.0, %v839
          %v841 = vpop.f32.mrf.mxu0
          %v842 = vadd.f32 0.0, %v841
          %v843 = vpop.f32.mrf.mxu0
          %v844 = vpop.f32.mrf.mxu0
          %845 = vdwg.mxu0
          %vm846 = vcmask 1041408
          %v847 = vsel %vm846, %v840, -inf
          %v848 = vsel %vm846, %v842, -inf
          %v849 = vmax.f32 %v847, %v848
          %850 = vmax.xlane.f32.xlu0 %v849
          %v851 = vpop.xlane.xlu0 %850
          %v852 = vsub.f32 %v840, %v851
          %v853 = vsub.f32 %v842, %v851
          %v854 = vmul.f32 %v852, 1.442695
          %v855 = vpow.pop %v854
          %v856 = vmul.f32 %v853, 1.442695
          %v857 = vpow.pop %v856
          %v858 = vsel %vm846, %v855, 0.0
          %v859 = vsel %vm846, %v857, 0.0
          %v860 = vadd.f32 %v858, %v859
          %861 = vadd.xlane.f32.xlu0 %v860
          %v862 = vpop.xlane.xlu0 %861
          %v863 = vrcp.pop %v862
          %v864 = vmul.f32 %v855, %v863
          %v865 = vmul.f32 %v857, %v863
          %v866 = vld [vmem:[%s3] sm:$0xf]
          %v867 = vld [vmem:[%s3 + $0x4] sm:$0xf]
          %v870 = vunpack.c.l.b16 %v866
          %v871 = vunpack.c.l.b16 %v867
          %v872 = vpack.c.b16 %v871, %v870
          %vm874 = vcmask 130048
          %v876 = vsel %vm874, %v780, 0
          %878 = vmatprep.subr.bf16.mxu0 0
          %879 = vmatpush1.bf16.msra.mxu0 0
          %880 = vmatprep.subr.bf16.mxu0 0
          %881 = vmatpush1.bf16.msra.mxu0 0
          %882 = vmatprep.subr.bf16.mxu0 0
          %883 = vmatpush1.bf16.msra.mxu0 0
          %884 = vmatprep.subr.bf16.mxu0 0
          %885 = vmatpush1.bf16.msra.mxu0 0
          %886 = vmatprep.subr.bf16.mxu0 0
          %887 = vmatpush1.bf16.msra.mxu0 0
          %888 = vmatprep.subr.bf16.mxu0 0
          %889 = vmatpush1.bf16.msra.mxu0 0
          %890 = vmatprep.subr.bf16.mxu0 0
          %891 = vmatpush1.bf16.msra.mxu0 0
          %892 = vmatprep.subr.bf16.mxu0 0
          %893 = vmatpush1.bf16.msra.mxu0 %v872
          %894 = vmatprep.subr.bf16.mxu0 0
          %895 = vmatpush2.bf16.msra.mxu0 0
          %896 = vmatprep.subr.bf16.mxu0 0
          %897 = vmatpush2.bf16.msra.mxu0 0
          %898 = vmatprep.subr.bf16.mxu0 0
          %899 = vmatpush2.bf16.msra.mxu0 0
          %900 = vmatprep.subr.bf16.mxu0 0
          %901 = vmatpush2.bf16.msra.mxu0 0
          %902 = vmatprep.subr.bf16.mxu0 0
          %903 = vmatpush2.bf16.msra.mxu0 0
          %904 = vmatprep.subr.bf16.mxu0 0
          %905 = vmatpush2.bf16.msra.mxu0 0
          %906 = vmatprep.subr.bf16.mxu0 0
          %907 = vmatpush2.bf16.msra.mxu0 0
          %908 = vmatprep.subr.bf16.mxu0 0
          %909 = vmatpush2.bf16.msra.mxu0 0
          %910 = vmatprep.mubr.bf16.mxu0 0
          %911 = vmatmul.mubr.bf16.gmra.mxu0 %v876
          %v912 = vpop.f32.mrf.mxu0
          %v913 = vadd.f32 0.0, %v912
          %v914 = vpop.f32.mrf.mxu0
          %v915 = vpop.f32.mrf.mxu0
          %v916 = vpop.f32.mrf.mxu0
          %917 = vdwg.mxu0
          %v919 = vlaneseq
          %v920 = vshrl.u32 %v919, 7
          %v921 = vsub.s32 0, %v920
          %v922 = vrot.slane %v526, %v921
          %v924 = vmul.f32 %v540, %v922
          %v926 = vlaneseq
          %v927 = vshrl.u32 %v926, 7
          %v928 = vsub.s32 0, %v927
          %v929 = vrot.slane %v527, %v928
          %930 = vrot.lane.b32.xlu0 %v929, 32
          %v931 = vpop.permute.xlu0 %930
          %v933 = vmul.f32 %v703, %v931
          %935 = vrot.lane.b32.xlu0 %v933, 96
          %v936 = vpop.permute.xlu0 %935
          %v938 = vadd.f32 %v924, %v936
          %v940 = vlaneseq
          %v941 = vshrl.u32 %v940, 7
          %v942 = vsub.s32 0, %v941
          %v943 = vrot.slane %v528, %v942
          %v945 = vmul.f32 %v913, %v943
          %v946 = vadd.f32 %v938, %v945
          %vm947 = vcmask 254976
          %v948 = vsel %vm947, %v946, 0.0
          %949 = vadd.xlane.f32.xlu0 %v948
          %v950 = vpop.xlane.xlu0 %949
          %v951 = vstv %s529
          %v952 = vadd.f32 %v950, %v951
          %v953 = vxor.u32 %v952, 2147483648
          %v954 = vmul.f32 %v953, 1.442695
          %v955 = vpow.pop %v954
          %v956 = vadd.f32 %v955, 1.0
          %v957 = vrcp.pop %v956
          %v958 = vmul.f32 1.0, %v957
          %v959 = vld [vmem:[%s7] sm:$0xff]
          %v960 = vld [vmem:[%s7 + $0x8] sm:$0xff]
          %v963 = vunpack.c.l.b16 %v959
          %v964 = vunpack.c.h.b16 %v959
          %v965 = vunpack.c.l.b16 %v960
          %v966 = vunpack.c.h.b16 %v960
          %v967 = vpack.c.b16 %v965, %v963
          %v968 = vpack.c.b16 %v966, %v964
          %971 = vmatprep.subr.bf16.mxu0 0
          %972 = vmatpush1.bf16.msra.mxu0 0
          %973 = vmatprep.subr.bf16.mxu0 0
          %974 = vmatpush1.bf16.msra.mxu0 0
          %975 = vmatprep.subr.bf16.mxu0 0
          %976 = vmatpush1.bf16.msra.mxu0 0
          %977 = vmatprep.subr.bf16.mxu0 0
          %978 = vmatpush1.bf16.msra.mxu0 0
          %979 = vmatprep.subr.bf16.mxu0 0
          %980 = vmatpush1.bf16.msra.mxu0 0
          %981 = vmatprep.subr.bf16.mxu0 0
          %982 = vmatpush1.bf16.msra.mxu0 0
          %983 = vmatprep.subr.bf16.mxu0 0
          %984 = vmatpush1.bf16.msra.mxu0 0
          %985 = vmatprep.subr.bf16.mxu0 %v968
          %986 = vmatpush1.bf16.msra.mxu0 %v967
          %987 = vmatprep.subr.bf16.mxu0 0
          %988 = vmatpush2.bf16.msra.mxu0 0
          %989 = vmatprep.subr.bf16.mxu0 0
          %990 = vmatpush2.bf16.msra.mxu0 0
          %991 = vmatprep.subr.bf16.mxu0 0
          %992 = vmatpush2.bf16.msra.mxu0 0
          %993 = vmatprep.subr.bf16.mxu0 0
          %994 = vmatpush2.bf16.msra.mxu0 0
          %995 = vmatprep.subr.bf16.mxu0 0
          %996 = vmatpush2.bf16.msra.mxu0 0
          %997 = vmatprep.subr.bf16.mxu0 0
          %998 = vmatpush2.bf16.msra.mxu0 0
          %999 = vmatprep.subr.bf16.mxu0 0
          %1000 = vmatpush2.bf16.msra.mxu0 0
          %1001 = vmatprep.subr.bf16.mxu0 0
          %1002 = vmatpush2.bf16.msra.mxu0 0
          %1003 = vmatprep.mubr.bf16.mxu0 0
          %1004 = vmatmul.mubr.bf16.gmra.mxu0 %v876
          %v1005 = vpop.f32.mrf.mxu0
          %v1006 = vadd.f32 0.0, %v1005
          %v1007 = vpop.f32.mrf.mxu0
          %v1008 = vadd.f32 0.0, %v1007
          %v1009 = vpop.f32.mrf.mxu0
          %v1010 = vpop.f32.mrf.mxu0
          %1011 = vdwg.mxu0
          %v1012 = vmul.f32 %v958, %v864
          %v1013 = vmul.f32 %v958, %v865
          %v1014 = vsub.f32 1.0, %v958
          %v1015 = vmul.f32 %v1014, %v1006
          %v1016 = vmul.f32 %v1014, %v1008
          %v1017 = vadd.f32 %v1012, %v1015
          %v1018 = vadd.f32 %v1013, %v1016
          %v1021 = vcombine.low %v1017, %v1018
          %v1023 = vunpack.c.l.s4 1966171168
          %v1024 = vunpack.c.0.s8 %v1023
          %v1025 = vlaneseq
          %v1026 = vshrl.u32 %v1025, 7
          %v1027 = vsub.s32 %v1024, %v1026
          %v1028 = vrot.slane %v1021, %v1027
          %v1029 = vcombine.high %v1028, %v1028
          %v1031 = vunpack.c.l.s4 1966171168
          %v1032 = vunpack.c.0.s8 %v1031
          %v1033 = vlaneseq
          %v1034 = vshrl.u32 %v1033, 7
          %v1035 = vsub.s32 %v1032, %v1034
          %v1036 = vrot.slane %v1028, %v1035
          %v1038 = vunpack.c.l.s4 1966171168
          %v1039 = vunpack.c.0.s8 %v1038
          %v1040 = vlaneseq
          %v1041 = vshrl.u32 %v1040, 7
          %v1042 = vsub.s32 %v1039, %v1041
          %v1043 = vrot.slane %v1029, %v1042
          %v1046 = vlaneseq
          %vm1047 = vcmp.ge.s32.totalorder %v1046, 0
          %vm1048 = vcmp.lt.s32.totalorder %v1046, 256
          %vm1049 = vmand %vm1047, %vm1048
          %s1050 = sshra.s32 %s534, 2
          %s1051 = sand.u32 %s534, 3
          %s1052 = sshra.s32 %s534, 2
          %s1053 = sand.u32 %s534, 3
          %s1054 = smul.u32 %s1050, 2
          %s1055 = smul.u32 %s1054, 4
          %s1056 = sadd.s32 %s1055, %s1053
          %s1057 = scalar_lea.vmem %s507, %s1056 [#allocation4]
          %1058 = vst.msk [vmem:[%s1057] ss:$4 sm:$0x3] %vm1049, %v1036
          %s1059 = sadd.s32 8, %s1056
          %s1060 = scalar_lea.vmem %s507, %s1059 [#allocation4]
          %1061 = vst.msk [vmem:[%s1060] ss:$4 sm:$0x3] %vm1049, %v1043
          %v1062 = vsel %vm846, %v1017, -inf
          %v1063 = vsel %vm846, %v1018, -inf
          %v1064 = vmax.f32 %v1062, %v1063
          %1065 = vmax.xlane.f32.xlu0 %v1064
          %v1066 = vpop.xlane.xlu0 %1065
          %vm1067 = vcmp.eq.f32.partialorder %v1017, %v1066
          %vm1068 = vcmp.eq.f32.partialorder %v1018, %v1066
          %v1069 = vsel %vm1067, %v522, 256
          %v1070 = vsel %vm1068, %v523, 256
          %v1071 = vsel %vm846, %v1069, 2147483647
          %v1072 = vsel %vm846, %v1070, 2147483647
          %vm1073 = vcmp.lt.s32.totalorder %v1071, %v1072
          %v1074 = vsel %vm1073, %v1071, %v1072
          %v1075 = vand.u32 %v1074, 65535
          %v1076 = vshra.s32 %v1074, 16
          %v1077 = vcvt.s32.f32 %v1075
          %v1078 = vcvt.s32.f32 %v1076
          %1079 = vmin.xlane.f32.xlu0 %v1078
          %v1080 = vpop.xlane.xlu0 %1079
          %vm1081 = vcmp.eq.f32.partialorder %v1078, %v1080
          %v1082 = vsel %vm1081, %v1077, inf
          %1083 = vmin.xlane.f32.xlu0 %v1082
          %v1084 = vpop.xlane.xlu0 %1083
          %v1085 = vcvt.f32.s32 %v1084
          %v1086 = vcvt.f32.s32 %v1080
          %v1087 = vshll.u32 %v1086, 16
          %v1088 = vadd.s32 %v1087, %v1085
          %vm1089 = vcmp.eq.s32.totalorder %v522, %v1088
          %vm1090 = vcmp.eq.s32.totalorder %v523, %v1088
          %v1091 = vsel %vm1089, 1, 0
          %v1092 = vsel %vm1090, 1, 0
          %v1093 = vcvt.s32.f32 %v1091
          %v1094 = vcvt.s32.f32 %v1092
          %v1095 = vpack.c.bf16 %v1093, %v1093
          %v1096 = vpack.c.bf16 %v1094, %v1094
          %v1097 = vld [vmem:[%s6] sm:$0xf]
          %v1098 = vld [vmem:[%s6 + $0x4] sm:$0xf]
          %v1099 = vld [vmem:[%s6 + $0x8] sm:$0xf]
          %v1100 = vld [vmem:[%s6 + $0xc] sm:$0xf]
          %v1101 = vld [vmem:[%s6 + $0x10] sm:$0xf]
          %v1102 = vld [vmem:[%s6 + $0x14] sm:$0xf]
          %v1103 = vld [vmem:[%s6 + $0x18] sm:$0xf]
          %v1104 = vld [vmem:[%s6 + $0x1c] sm:$0xf]
          %v1105 = vld [vmem:[%s6 + $0x20] sm:$0xf]
          %v1106 = vld [vmem:[%s6 + $0x24] sm:$0xf]
          %v1107 = vld [vmem:[%s6 + $0x28] sm:$0xf]
          %v1108 = vld [vmem:[%s6 + $0x2c] sm:$0xf]
          %v1109 = vld [vmem:[%s6 + $0x30] sm:$0xf]
          %v1110 = vld [vmem:[%s6 + $0x34] sm:$0xf]
          %v1111 = vld [vmem:[%s6 + $0x38] sm:$0xf]
          %v1112 = vld [vmem:[%s6 + $0x3c] sm:$0xf]
          %v1113 = vld [vmem:[%s6 + $0x40] sm:$0xf]
          %v1114 = vld [vmem:[%s6 + $0x44] sm:$0xf]
          %v1115 = vld [vmem:[%s6 + $0x48] sm:$0xf]
          %v1116 = vld [vmem:[%s6 + $0x4c] sm:$0xf]
          %v1117 = vld [vmem:[%s6 + $0x50] sm:$0xf]
          %v1118 = vld [vmem:[%s6 + $0x54] sm:$0xf]
          %v1119 = vld [vmem:[%s6 + $0x58] sm:$0xf]
          %v1120 = vld [vmem:[%s6 + $0x5c] sm:$0xf]
          %v1121 = vld [vmem:[%s6 + $0x60] sm:$0xf]
          %v1122 = vld [vmem:[%s6 + $0x64] sm:$0xf]
          %v1123 = vld [vmem:[%s6 + $0x68] sm:$0xf]
          %v1124 = vld [vmem:[%s6 + $0x6c] sm:$0xf]
          %v1125 = vld [vmem:[%s6 + $0x70] sm:$0xf]
          %v1126 = vld [vmem:[%s6 + $0x74] sm:$0xf]
          %v1127 = vld [vmem:[%s6 + $0x78] sm:$0xf]
          %v1128 = vld [vmem:[%s6 + $0x7c] sm:$0xf]
          %v1161 = vunpack.c.l.b16 %v1097
          %v1162 = vunpack.c.l.b16 %v1098
          %v1163 = vunpack.c.l.b16 %v1099
          %v1164 = vunpack.c.l.b16 %v1100
          %v1165 = vunpack.c.l.b16 %v1101
          %v1166 = vunpack.c.l.b16 %v1102
          %v1167 = vunpack.c.l.b16 %v1103
          %v1168 = vunpack.c.l.b16 %v1104
          %v1169 = vunpack.c.l.b16 %v1105
          %v1170 = vunpack.c.l.b16 %v1106
          %v1171 = vunpack.c.l.b16 %v1107
          %v1172 = vunpack.c.l.b16 %v1108
          %v1173 = vunpack.c.l.b16 %v1109
          %v1174 = vunpack.c.l.b16 %v1110
          %v1175 = vunpack.c.l.b16 %v1111
          %v1176 = vunpack.c.l.b16 %v1112
          %v1177 = vunpack.c.l.b16 %v1113
          %v1178 = vunpack.c.l.b16 %v1114
          %v1179 = vunpack.c.l.b16 %v1115
          %v1180 = vunpack.c.l.b16 %v1116
          %v1181 = vunpack.c.l.b16 %v1117
          %v1182 = vunpack.c.l.b16 %v1118
          %v1183 = vunpack.c.l.b16 %v1119
          %v1184 = vunpack.c.l.b16 %v1120
          %v1185 = vunpack.c.l.b16 %v1121
          %v1186 = vunpack.c.l.b16 %v1122
          %v1187 = vunpack.c.l.b16 %v1123
          %v1188 = vunpack.c.l.b16 %v1124
          %v1189 = vunpack.c.l.b16 %v1125
          %v1190 = vunpack.c.l.b16 %v1126
          %v1191 = vunpack.c.l.b16 %v1127
          %v1192 = vunpack.c.l.b16 %v1128
          %v1193 = vpack.c.b16 %v1162, %v1161
          %v1194 = vpack.c.b16 %v1164, %v1163
          %v1195 = vpack.c.b16 %v1166, %v1165
          %v1196 = vpack.c.b16 %v1168, %v1167
          %v1197 = vpack.c.b16 %v1170, %v1169
          %v1198 = vpack.c.b16 %v1172, %v1171
          %v1199 = vpack.c.b16 %v1174, %v1173
          %v1200 = vpack.c.b16 %v1176, %v1175
          %v1201 = vpack.c.b16 %v1178, %v1177
          %v1202 = vpack.c.b16 %v1180, %v1179
          %v1203 = vpack.c.b16 %v1182, %v1181
          %v1204 = vpack.c.b16 %v1184, %v1183
          %v1205 = vpack.c.b16 %v1186, %v1185
          %v1206 = vpack.c.b16 %v1188, %v1187
          %v1207 = vpack.c.b16 %v1190, %v1189
          %v1208 = vpack.c.b16 %v1192, %v1191
          %1225 = vmatprep.subr.bf16.mxu0 0
          %1226 = vmatpush1.bf16.msra.mxu0 %v1200
          %1227 = vmatprep.subr.bf16.mxu0 0
          %1228 = vmatpush1.bf16.msra.mxu0 %v1199
          %1229 = vmatprep.subr.bf16.mxu0 0
          %1230 = vmatpush1.bf16.msra.mxu0 %v1198
          %1231 = vmatprep.subr.bf16.mxu0 0
          %1232 = vmatpush1.bf16.msra.mxu0 %v1197
          %1233 = vmatprep.subr.bf16.mxu0 0
          %1234 = vmatpush1.bf16.msra.mxu0 %v1196
          %1235 = vmatprep.subr.bf16.mxu0 0
          %1236 = vmatpush1.bf16.msra.mxu0 %v1195
          %1237 = vmatprep.subr.bf16.mxu0 0
          %1238 = vmatpush1.bf16.msra.mxu0 %v1194
          %1239 = vmatprep.subr.bf16.mxu0 0
          %1240 = vmatpush1.bf16.msra.mxu0 %v1193
          %1241 = vmatprep.subr.bf16.mxu0 0
          %1242 = vmatpush2.bf16.msra.mxu0 %v1208
          %1243 = vmatprep.subr.bf16.mxu0 0
          %1244 = vmatpush2.bf16.msra.mxu0 %v1207
          %1245 = vmatprep.subr.bf16.mxu0 0
          %1246 = vmatpush2.bf16.msra.mxu0 %v1206
          %1247 = vmatprep.subr.bf16.mxu0 0
          %1248 = vmatpush2.bf16.msra.mxu0 %v1205
          %1249 = vmatprep.subr.bf16.mxu0 0
          %1250 = vmatpush2.bf16.msra.mxu0 %v1204
          %1251 = vmatprep.subr.bf16.mxu0 0
          %1252 = vmatpush2.bf16.msra.mxu0 %v1203
          %1253 = vmatprep.subr.bf16.mxu0 0
          %1254 = vmatpush2.bf16.msra.mxu0 %v1202
          %1255 = vmatprep.subr.bf16.mxu0 0
          %1256 = vmatpush2.bf16.msra.mxu0 %v1201
          %1257 = vmatprep.mubr.bf16.mxu0 %v1096
          %1258 = vmatmul.mubr.bf16.gmra.mxu0 %v1095
          %v1259 = vpop.f32.mrf.mxu0
          %v1260 = vadd.f32 0.0, %v1259
          %v1261 = vpop.f32.mrf.mxu0
          %v1262 = vpop.f32.mrf.mxu0
          %v1263 = vpop.f32.mrf.mxu0
          %1264 = vdwg.mxu0
          %1266 = vrot.lane.b32.xlu0 %v703, 96
          %v1267 = vpop.permute.xlu0 %1266
        $region93: #{tpu_custom_call.1} parent=83 // loop_footer
          %s538 = sadd.s32 1, %s534
        $region94: #{tpu_custom_call.1} parent=83 // loop_footer_branch
          %533 = sbr.rel target = $region90
        $region95: #{tpu_custom_call.1} parent=83 // loop_exit
          _
        %vm1269 = vcmask 254976
        %1270 = vst.msk [vmem:[#allocation2] sm:$0x3] %vm1269, %v539
        %s1271 = sand.u32 %s377, 1
        %s1272 = sand.u32 %s377, 1
        %s1273 = smul.addr %s1272, 16
        %s1274 = scalar_lea.vmem [#allocation4], %s1273
        // Predicated region
        $region96: #{tpu_custom_call.1} parent=83 // pred_check
          %p1275 = pneg %p387
        $region97: #{tpu_custom_call.1} parent=83 // pred_check_branch
          %1277 = sbr.rel (%p1275) target = $region99
        $region98: #{tpu_custom_call.1} parent=83 // pred_region
          %s1278 = smul.addr %s28, 2
          %s1279 = smul.addr %s1278, 4
          %s1280 = scalar_lea.vmem %s16, %s1279
          // Predicated region
          $region100: #{tpu_custom_call.1} parent=98 // pred_check
            _
          $region101: #{tpu_custom_call.1} parent=98 // pred_check_branch
            %1282 = sbr.rel (0) target = $region103
          $region102: #{tpu_custom_call.1} parent=98 // pred_region
            // Predicated region
            $region104: #{tpu_custom_call.1} parent=102 // pred_check
              _
            $region105: #{tpu_custom_call.1} parent=102 // pred_check_branch
              %1284 = sbr.rel (0) target = $region107
            $region106: #{tpu_custom_call.1} parent=102 // pred_region
              // Predicated region
              $region119: #{tpu_custom_call.1} parent=106 // pred_check
                _
              $region120: #{tpu_custom_call.1} parent=106 // pred_check_branch
                %1302 = sbr.rel (0) target = $region122
              $region121: #{tpu_custom_call.1} parent=106 // pred_region
                loop: start=0, step=1, limit=1
                $region123: #{tpu_custom_call.1} parent=121 // loop_pre_header
                  _
                $region124: #{tpu_custom_call.1} parent=121 // loop_header
                  %s1304 = sphi 0, %s1308
                  %p1305 = scmp.ge.s32.totalorder %s1304, 1
                  %s1309 = sphi %s1274, %s1274
                  %s1310 = sphi %s1280, %s1280
                $region125: #{tpu_custom_call.1} parent=121 // loop_header_branch
                  %1307 = sbr.rel (%p1305) target = $region129
                $region126: #{tpu_custom_call.1} parent=121 // loop_body
                  %v1311 = vld [vmem:[%s1309] sm:$0xff]
                  %1312 = vst [vmem:[%s1310] sm:$0xff] %v1311
                  %v1313 = vld [vmem:[%s1309 + $0x8] sm:$0xff]
                  %1314 = vst [vmem:[%s1310 + $0x10] sm:$0xff] %v1313
                $region127: #{tpu_custom_call.1} parent=121 // loop_footer
                  %s1308 = sadd.s32 1, %s1304
                $region128: #{tpu_custom_call.1} parent=121 // loop_footer_branch
                  %1303 = sbr.rel target = $region124
                $region129: #{tpu_custom_call.1} parent=121 // loop_exit
                  _
              $region122: #{tpu_custom_call.1} parent=106 // pred_fallthru
                _
              // Predicated region
              $region130: #{tpu_custom_call.1} parent=106 // pred_check
                _
              $region131: #{tpu_custom_call.1} parent=106 // pred_check_branch
                %1316 = sbr.rel target = $region133
              $region132: #{tpu_custom_call.1} parent=106 // pred_region
                _
              $region133: #{tpu_custom_call.1} parent=106 // pred_fallthru
                _
            $region107: #{tpu_custom_call.1} parent=102 // pred_fallthru
              _
            // Predicated region
            $region108: #{tpu_custom_call.1} parent=102 // pred_check
              _
            $region109: #{tpu_custom_call.1} parent=102 // pred_check_branch
              %1286 = sbr.rel target = $region111
            $region110: #{tpu_custom_call.1} parent=102 // pred_region
              %s1288 = ssub.s32 256, 1
              loop: start=0, step=1, limit=1
              $region112: #{tpu_custom_call.1} parent=110 // loop_pre_header
                _
              $region113: #{tpu_custom_call.1} parent=110 // loop_header
                %s1290 = sphi 0, %s1294
                %p1291 = scmp.ge.s32.totalorder %s1290, 1
                %s1295 = sphi %s1274, %s1274
                %s1296 = sphi %s1280, %s1280
              $region114: #{tpu_custom_call.1} parent=110 // loop_header_branch
                %1293 = sbr.rel (%p1291) target = $region118
              $region115: #{tpu_custom_call.1} parent=110 // loop_body
                %v1297 = vld [vmem:[%s1295] sm:%s1288]
                %1298 = vst [vmem:[%s1296] sm:%s1288] %v1297
                %v1299 = vld [vmem:[%s1295 + $0x8] sm:%s1288]
                %1300 = vst [vmem:[%s1296 + $0x10] sm:%s1288] %v1299
              $region116: #{tpu_custom_call.1} parent=110 // loop_footer
                %s1294 = sadd.s32 1, %s1290
              $region117: #{tpu_custom_call.1} parent=110 // loop_footer_branch
                %1289 = sbr.rel target = $region113
              $region118: #{tpu_custom_call.1} parent=110 // loop_exit
                _
            $region111: #{tpu_custom_call.1} parent=102 // pred_fallthru
              _
          $region103: #{tpu_custom_call.1} parent=98 // pred_fallthru
            _
          %1317 = vnop
        $region99: #{tpu_custom_call.1} parent=83 // pred_fallthru
          _
      $region84: #{tpu_custom_call.1} parent=5 // pred_fallthru
        _
      %p1318 = scmp.le.s32.totalorder 2, %s23
      // Predicated region
      $region134: #{tpu_custom_call.1} parent=5 // pred_check
        %p1319 = pneg %p1318
      $region135: #{tpu_custom_call.1} parent=5 // pred_check_branch
        %1321 = sbr.rel (%p1319) target = $region137
      $region136: #{tpu_custom_call.1} parent=5 // pred_region
        %s1322 = ssub.s32 %s23, 2
        // Predicated region
        $region138: #{tpu_custom_call.1} parent=136 // pred_check
          %p1323 = pneg %p393
        $region139: #{tpu_custom_call.1} parent=136 // pred_check_branch
          %1325 = sbr.rel (%p1323) target = $region141
        $region140: #{tpu_custom_call.1} parent=136 // pred_region
          %s1326 = sand.u32 %s378, 1
          %s1327 = sand.u32 %s378, 1
          %s1328 = smul.addr %s1327, 16
          %s1329 = scalar_lea.vmem [#allocation4], %s1328
        $region141: #{tpu_custom_call.1} parent=136 // pred_fallthru
          _
      $region137: #{tpu_custom_call.1} parent=5 // pred_fallthru
        _
    $region6: #{tpu_custom_call.1} parent=1 // loop_footer
      %s27 = sadd.s32 1, %s23
    $region7: #{tpu_custom_call.1} parent=1 // loop_footer_branch
      %22 = sbr.rel target = $region3
    $region8: #{tpu_custom_call.1} parent=1 // loop_exit
      _

</llo_original>
